<compile_context>
chip_gen: v6e
topology: v6e:2x2x1
jax: 0.10.0
libtpu: 0.0.40
codegen_flags: <defaults>
</compile_context>

<pallas_src>
import functools

import jax
import jax.numpy as jnp
from jax.experimental import pallas as pl
from jax.experimental.pallas import tpu as pltpu


def _transformer_layer_kernel(x_ref, wq_ref, wk_ref, wv_ref, bi_ref,
                              wo_ref, bo_ref, w1_ref, w2_ref, out_ref,
                              *, num_heads):
    bn, L, C = x_ref.shape                    # static block shape
    hd = C // num_heads
    scale = float(hd) ** -0.5
    f32 = jnp.float32

    # Merge the batch block into the matmul M dimension (bn*L rows).
    x = x_ref[...].reshape(bn * L, C)

    # Fused (pre-projection ∘ in-projection) Q/K/V, bias from in_proj_bias.
    q = jnp.dot(x, wq_ref[...], preferred_element_type=f32) + bi_ref[0, :]
    k = jnp.dot(x, wk_ref[...], preferred_element_type=f32) + bi_ref[1, :]
    v = jnp.dot(x, wv_ref[...], preferred_element_type=f32) + bi_ref[2, :]

    # Per-(batch, head) scaled-dot-product attention; bn and num_heads are
    # small compile-time constants so the loops unroll statically.
    rows = []
    for b in range(bn):
        r0 = b * L
        head_outs = []
        for h in range(num_heads):
            c0 = h * hd
            qh = q[r0:r0 + L, c0:c0 + hd] * scale        # (L, hd)
            kh = k[r0:r0 + L, c0:c0 + hd]
            vh = v[r0:r0 + L, c0:c0 + hd]
            # scores = qh @ kh^T via dot_general (contract hd, no transpose op)
            s = jax.lax.dot_general(qh, kh, (((1,), (1,)), ((), ())),
                                    preferred_element_type=f32)   # (L, L)
            s = s - jnp.max(s, axis=-1, keepdims=True)
            p = jnp.exp(s)
            p = p / jnp.sum(p, axis=-1, keepdims=True)
            head_outs.append(jnp.dot(p, vh, preferred_element_type=f32))
        rows.append(jnp.concatenate(head_outs, axis=-1))          # (L, C)
    ctx = jnp.concatenate(rows, axis=0)                           # (bn*L, C)

    # Attention out-projection + first residual (residual taken from the
    # already-loaded x block — no second HBM read).
    x1 = jnp.dot(ctx, wo_ref[...], preferred_element_type=f32) + bo_ref[0, :] + x

    # Feed-forward (two bias-free Linears) + second residual.
    h1 = jnp.dot(x1, w1_ref[...], preferred_element_type=f32)
    out = jnp.dot(h1, w2_ref[...], preferred_element_type=f32) + x1

    out_ref[...] = out.reshape(bn, L, C)


def transformer_layer(x_lnc, params, *, num_heads):
    """x_lnc: (L, N, C) float32 (seq-first, PyTorch MHA convention) -> (L, N, C)."""
    wq, wk, wv, wiq, wik, wiv, bi, wo, bo, w1, w2 = params
    L, N, C = x_lnc.shape
    assert C % num_heads == 0

    # Fold the bias-free pre-projections into the MHA in-projections:
    #   (x @ wq) @ wiq == x @ (wq @ wiq)   (all stored as (in, out)).
    wq_e = wq @ wiq
    wk_e = wk @ wik
    wv_e = wv @ wiv

    # Batch-major layout so each grid block is (bn, L, C) with the last two
    # dims equal to the full array dims (tiling-friendly).
    x_nlc = jnp.transpose(x_lnc, (1, 0, 2))

    # Pack several batch elements per grid step to raise MXU M = bn*L.
    bn = max(d for d in (8, 4, 2, 1) if N % d == 0)

    full = lambda a: pl.BlockSpec(a.shape, lambda b: (0,) * a.ndim)

    out_nlc = pl.pallas_call(
        functools.partial(_transformer_layer_kernel, num_heads=num_heads),
        out_shape=jax.ShapeDtypeStruct((N, L, C), jnp.float32),
        grid_spec=pltpu.PrefetchScalarGridSpec(
            num_scalar_prefetch=0,
            grid=(N // bn,),
            in_specs=[
                pl.BlockSpec((bn, L, C), lambda b: (b, 0, 0)),   # activations
                full(wq_e),   # (C, C) fused Q weight
                full(wk_e),   # (C, C) fused K weight
                full(wv_e),   # (C, C) fused V weight
                full(bi),     # (3, C) in_proj bias
                full(wo),     # (C, C) out_proj weight
                full(bo),     # (1, C) out_proj bias
                full(w1),     # (C, C) fc1
                full(w2),     # (C, C) fc2
            ],
            out_specs=pl.BlockSpec((bn, L, C), lambda b: (b, 0, 0)),
        ),
        compiler_params=pltpu.CompilerParams(
            dimension_semantics=("parallel",)),   # batch blocks are independent
    )(x_nlc, wq_e, wk_e, wv_e, bi, wo, bo, w1, w2)

    return jnp.transpose(out_nlc, (1, 0, 2))


def _reference(x_lnc, params, num_heads):
    """Pure-JAX mirror of the PyTorch forward (unfused weights)."""
    wq, wk, wv, wiq, wik, wiv, bi, wo, bo, w1, w2 = params
    L, N, C = x_lnc.shape
    hd = C // num_heads

    q = (x_lnc @ wq) @ wiq + bi[0]
    k = (x_lnc @ wk) @ wik + bi[1]
    v = (x_lnc @ wv) @ wiv + bi[2]

    def split(t):  # (L, N, C) -> (N, H, L, hd)
        return jnp.transpose(t.reshape(L, N, num_heads, hd), (1, 2, 0, 3))

    qh = split(q) * (float(hd) ** -0.5)
    kh = split(k)
    vh = split(v)
    s = jnp.einsum('nhqd,nhkd->nhqk', qh, kh)
    p = jax.nn.softmax(s, axis=-1)
    ctx = jnp.einsum('nhqk,nhkd->nhqd', p, vh)               # (N, H, L, hd)
    ctx = jnp.transpose(ctx, (2, 0, 1, 3)).reshape(L, N, C)

    x1 = ctx @ wo + bo[0] + x_lnc
    return (x1 @ w1) @ w2 + x1


def init_params(key, dim):
    ks = jax.random.split(key, 11)
    mk = lambda k: 0.1 * jax.random.normal(k, (dim, dim), jnp.float32)  # (in, out)
    wq, wk, wv = mk(ks[0]), mk(ks[1]), mk(ks[2])          # q/k/v pre-proj (no bias)
    wiq, wik, wiv = mk(ks[3]), mk(ks[4]), mk(ks[5])       # MHA in_proj chunks
    bi = 0.1 * jax.random.normal(ks[6], (3, dim), jnp.float32)   # in_proj bias
    wo = mk(ks[7])                                        # MHA out_proj weight
    bo = 0.1 * jax.random.normal(ks[8], (1, dim), jnp.float32)   # out_proj bias
    w1, w2 = mk(ks[9]), mk(ks[10])                        # fc1 / fc2 (no bias)
    return (wq, wk, wv, wiq, wik, wiv, bi, wo, bo, w1, w2)


if __name__ == "__main__":
    key = jax.random.PRNGKey(0)
    kx, kp = jax.random.split(key)

    L, N, C, H = 8, 2, 32, 4          # seq, batch, embed dim, num_heads
    x = jax.random.normal(kx, (L, N, C), jnp.float32)
    params = init_params(kp, C)

    out = jax.block_until_ready(transformer_layer(x, params, num_heads=H))
    ref = jax.block_until_ready(_reference(x, params, H))

    assert out.shape == (L, N, C)
    assert jnp.allclose(out, ref, atol=1e-4, rtol=1e-4)
    print("KERNEL_OK")
</pallas_src>

<mosaic_0001>
module attributes {stable_mosaic.version = 11 : i64} {
  func.func @_transformer_layer_kernel(%arg0: i32, %arg1: memref<2x8x32xf32, #tpu.memory_space<vmem>>, %arg2: memref<32x32xf32, #tpu.memory_space<vmem>>, %arg3: memref<32x32xf32, #tpu.memory_space<vmem>>, %arg4: memref<32x32xf32, #tpu.memory_space<vmem>>, %arg5: memref<3x32xf32, #tpu.memory_space<vmem>>, %arg6: memref<32x32xf32, #tpu.memory_space<vmem>>, %arg7: memref<1x32xf32, #tpu.memory_space<vmem>>, %arg8: memref<32x32xf32, #tpu.memory_space<vmem>>, %arg9: memref<32x32xf32, #tpu.memory_space<vmem>>, %arg10: memref<2x8x32xf32, #tpu.memory_space<vmem>>) attributes {dimension_semantics = [#tpu.dimension_semantics<parallel>], iteration_bounds = array<i64: 1>, scalar_prefetch = 0 : i64, scratch_operands = 0 : i64, tpu.core_type = #tpu.core_type<tc>, window_params = [{transform_indices = @transform_0, window_bounds = array<i64: 2, 8, 32>}, {pipeline_mode = #tpu.pipeline_mode<synchronous>, transform_indices = @transform_1, window_bounds = array<i64: 32, 32>}, {pipeline_mode = #tpu.pipeline_mode<synchronous>, transform_indices = @transform_2, window_bounds = array<i64: 32, 32>}, {pipeline_mode = #tpu.pipeline_mode<synchronous>, transform_indices = @transform_3, window_bounds = array<i64: 32, 32>}, {pipeline_mode = #tpu.pipeline_mode<synchronous>, transform_indices = @transform_4, window_bounds = array<i64: 3, 32>}, {pipeline_mode = #tpu.pipeline_mode<synchronous>, transform_indices = @transform_5, window_bounds = array<i64: 32, 32>}, {pipeline_mode = #tpu.pipeline_mode<synchronous>, transform_indices = @transform_6, window_bounds = array<i64: 1, 32>}, {pipeline_mode = #tpu.pipeline_mode<synchronous>, transform_indices = @transform_7, window_bounds = array<i64: 32, 32>}, {pipeline_mode = #tpu.pipeline_mode<synchronous>, transform_indices = @transform_8, window_bounds = array<i64: 32, 32>}, {transform_indices = @transform_9, window_bounds = array<i64: 2, 8, 32>}]} {
    %c0 = arith.constant 0 : index
    %c0_0 = arith.constant 0 : index
    %c0_1 = arith.constant 0 : index
    %0 = vector.load %arg1[%c0, %c0_0, %c0_1] : memref<2x8x32xf32, #tpu.memory_space<vmem>>, vector<2x8x32xf32>
    %1 = vector.shape_cast %0 : vector<2x8x32xf32> to vector<16x32xf32>
    %c0_2 = arith.constant 0 : index
    %c0_3 = arith.constant 0 : index
    %2 = vector.load %arg2[%c0_2, %c0_3] : memref<32x32xf32, #tpu.memory_space<vmem>>, vector<32x32xf32>
    %cst = arith.constant dense<0.000000e+00> : vector<16x32xf32>
    %3 = tpu.matmul %1, %2, %cst {dimension_numbers = #tpu.dot_dimension_numbers<[1], [0], [0], [1], [0, 0, 1, 1], [], []>} : vector<16x32xf32>, vector<32x32xf32>, vector<16x32xf32> -> vector<16x32xf32>
    %c0_4 = arith.constant 0 : index
    %c0_5 = arith.constant 0 : index
    %4 = vector.load %arg5[%c0_4, %c0_5] : memref<3x32xf32, #tpu.memory_space<vmem>>, vector<1x32xf32>
    %5 = vector.shape_cast %4 : vector<1x32xf32> to vector<32xf32>
    %6 = vector.shape_cast %5 : vector<32xf32> to vector<1x32xf32>
    %7 = vector.broadcast %6 : vector<1x32xf32> to vector<16x32xf32>
    %8 = arith.addf %3, %7 : vector<16x32xf32>
    %c0_6 = arith.constant 0 : index
    %c0_7 = arith.constant 0 : index
    %9 = vector.load %arg3[%c0_6, %c0_7] : memref<32x32xf32, #tpu.memory_space<vmem>>, vector<32x32xf32>
    %cst_8 = arith.constant dense<0.000000e+00> : vector<16x32xf32>
    %10 = tpu.matmul %1, %9, %cst_8 {dimension_numbers = #tpu.dot_dimension_numbers<[1], [0], [0], [1], [0, 0, 1, 1], [], []>} : vector<16x32xf32>, vector<32x32xf32>, vector<16x32xf32> -> vector<16x32xf32>
    %c1 = arith.constant 1 : index
    %c0_9 = arith.constant 0 : index
    %11 = vector.load %arg5[%c1, %c0_9] : memref<3x32xf32, #tpu.memory_space<vmem>>, vector<1x32xf32>
    %12 = vector.shape_cast %11 : vector<1x32xf32> to vector<32xf32>
    %13 = vector.shape_cast %12 : vector<32xf32> to vector<1x32xf32>
    %14 = vector.broadcast %13 : vector<1x32xf32> to vector<16x32xf32>
    %15 = arith.addf %10, %14 : vector<16x32xf32>
    %c0_10 = arith.constant 0 : index
    %c0_11 = arith.constant 0 : index
    %16 = vector.load %arg4[%c0_10, %c0_11] : memref<32x32xf32, #tpu.memory_space<vmem>>, vector<32x32xf32>
    %cst_12 = arith.constant dense<0.000000e+00> : vector<16x32xf32>
    %17 = tpu.matmul %1, %16, %cst_12 {dimension_numbers = #tpu.dot_dimension_numbers<[1], [0], [0], [1], [0, 0, 1, 1], [], []>} : vector<16x32xf32>, vector<32x32xf32>, vector<16x32xf32> -> vector<16x32xf32>
    %c2 = arith.constant 2 : index
    %c0_13 = arith.constant 0 : index
    %18 = vector.load %arg5[%c2, %c0_13] : memref<3x32xf32, #tpu.memory_space<vmem>>, vector<1x32xf32>
    %19 = vector.shape_cast %18 : vector<1x32xf32> to vector<32xf32>
    %20 = vector.shape_cast %19 : vector<32xf32> to vector<1x32xf32>
    %21 = vector.broadcast %20 : vector<1x32xf32> to vector<16x32xf32>
    %22 = arith.addf %17, %21 : vector<16x32xf32>
    %23 = vector.extract_strided_slice %8 {offsets = [0, 0], sizes = [8, 8], strides = [1, 1]} : vector<16x32xf32> to vector<8x8xf32>
    %cst_14 = arith.constant 0.353553385 : f32
    %24 = vector.broadcast %cst_14 : f32 to vector<8x8xf32>
    %25 = arith.mulf %23, %24 : vector<8x8xf32>
    %26 = vector.extract_strided_slice %15 {offsets = [0, 0], sizes = [8, 8], strides = [1, 1]} : vector<16x32xf32> to vector<8x8xf32>
    %27 = vector.extract_strided_slice %22 {offsets = [0, 0], sizes = [8, 8], strides = [1, 1]} : vector<16x32xf32> to vector<8x8xf32>
    %cst_15 = arith.constant dense<0.000000e+00> : vector<8x8xf32>
    %28 = tpu.matmul %25, %26, %cst_15 {dimension_numbers = #tpu.dot_dimension_numbers<[1], [1], [0], [0], [0, 0, 1, 0], [], []>} : vector<8x8xf32>, vector<8x8xf32>, vector<8x8xf32> -> vector<8x8xf32>
    %cst_16 = arith.constant dense<0xFF800000> : vector<8xf32>
    %29 = vector.multi_reduction <maximumf>, %28, %cst_16 [1] : vector<8x8xf32> to vector<8xf32>
    %30 = vector.shape_cast %29 : vector<8xf32> to vector<8x1xf32>
    %31 = vector.broadcast %30 : vector<8x1xf32> to vector<8x8xf32>
    %32 = arith.subf %28, %31 : vector<8x8xf32>
    %33 = math.exp %32 : vector<8x8xf32>
    %cst_17 = arith.constant dense<0.000000e+00> : vector<8xf32>
    %34 = vector.multi_reduction <add>, %33, %cst_17 [1] : vector<8x8xf32> to vector<8xf32>
    %35 = vector.shape_cast %34 : vector<8xf32> to vector<8x1xf32>
    %36 = vector.broadcast %35 : vector<8x1xf32> to vector<8x8xf32>
    %37 = arith.divf %33, %36 : vector<8x8xf32>
    %cst_18 = arith.constant dense<0.000000e+00> : vector<8x8xf32>
    %38 = tpu.matmul %37, %27, %cst_18 {dimension_numbers = #tpu.dot_dimension_numbers<[1], [0], [0], [1], [0, 0, 1, 1], [], []>} : vector<8x8xf32>, vector<8x8xf32>, vector<8x8xf32> -> vector<8x8xf32>
    %39 = vector.extract_strided_slice %8 {offsets = [0, 8], sizes = [8, 8], strides = [1, 1]} : vector<16x32xf32> to vector<8x8xf32>
    %cst_19 = arith.constant 0.353553385 : f32
    %40 = vector.broadcast %cst_19 : f32 to vector<8x8xf32>
    %41 = arith.mulf %39, %40 : vector<8x8xf32>
    %42 = vector.extract_strided_slice %15 {offsets = [0, 8], sizes = [8, 8], strides = [1, 1]} : vector<16x32xf32> to vector<8x8xf32>
    %43 = vector.extract_strided_slice %22 {offsets = [0, 8], sizes = [8, 8], strides = [1, 1]} : vector<16x32xf32> to vector<8x8xf32>
    %cst_20 = arith.constant dense<0.000000e+00> : vector<8x8xf32>
    %44 = tpu.matmul %41, %42, %cst_20 {dimension_numbers = #tpu.dot_dimension_numbers<[1], [1], [0], [0], [0, 0, 1, 0], [], []>} : vector<8x8xf32>, vector<8x8xf32>, vector<8x8xf32> -> vector<8x8xf32>
    %cst_21 = arith.constant dense<0xFF800000> : vector<8xf32>
    %45 = vector.multi_reduction <maximumf>, %44, %cst_21 [1] : vector<8x8xf32> to vector<8xf32>
    %46 = vector.shape_cast %45 : vector<8xf32> to vector<8x1xf32>
    %47 = vector.broadcast %46 : vector<8x1xf32> to vector<8x8xf32>
    %48 = arith.subf %44, %47 : vector<8x8xf32>
    %49 = math.exp %48 : vector<8x8xf32>
    %cst_22 = arith.constant dense<0.000000e+00> : vector<8xf32>
    %50 = vector.multi_reduction <add>, %49, %cst_22 [1] : vector<8x8xf32> to vector<8xf32>
    %51 = vector.shape_cast %50 : vector<8xf32> to vector<8x1xf32>
    %52 = vector.broadcast %51 : vector<8x1xf32> to vector<8x8xf32>
    %53 = arith.divf %49, %52 : vector<8x8xf32>
    %cst_23 = arith.constant dense<0.000000e+00> : vector<8x8xf32>
    %54 = tpu.matmul %53, %43, %cst_23 {dimension_numbers = #tpu.dot_dimension_numbers<[1], [0], [0], [1], [0, 0, 1, 1], [], []>} : vector<8x8xf32>, vector<8x8xf32>, vector<8x8xf32> -> vector<8x8xf32>
    %55 = vector.extract_strided_slice %8 {offsets = [0, 16], sizes = [8, 8], strides = [1, 1]} : vector<16x32xf32> to vector<8x8xf32>
    %cst_24 = arith.constant 0.353553385 : f32
    %56 = vector.broadcast %cst_24 : f32 to vector<8x8xf32>
    %57 = arith.mulf %55, %56 : vector<8x8xf32>
    %58 = vector.extract_strided_slice %15 {offsets = [0, 16], sizes = [8, 8], strides = [1, 1]} : vector<16x32xf32> to vector<8x8xf32>
    %59 = vector.extract_strided_slice %22 {offsets = [0, 16], sizes = [8, 8], strides = [1, 1]} : vector<16x32xf32> to vector<8x8xf32>
    %cst_25 = arith.constant dense<0.000000e+00> : vector<8x8xf32>
    %60 = tpu.matmul %57, %58, %cst_25 {dimension_numbers = #tpu.dot_dimension_numbers<[1], [1], [0], [0], [0, 0, 1, 0], [], []>} : vector<8x8xf32>, vector<8x8xf32>, vector<8x8xf32> -> vector<8x8xf32>
    %cst_26 = arith.constant dense<0xFF800000> : vector<8xf32>
    %61 = vector.multi_reduction <maximumf>, %60, %cst_26 [1] : vector<8x8xf32> to vector<8xf32>
    %62 = vector.shape_cast %61 : vector<8xf32> to vector<8x1xf32>
    %63 = vector.broadcast %62 : vector<8x1xf32> to vector<8x8xf32>
    %64 = arith.subf %60, %63 : vector<8x8xf32>
    %65 = math.exp %64 : vector<8x8xf32>
    %cst_27 = arith.constant dense<0.000000e+00> : vector<8xf32>
    %66 = vector.multi_reduction <add>, %65, %cst_27 [1] : vector<8x8xf32> to vector<8xf32>
    %67 = vector.shape_cast %66 : vector<8xf32> to vector<8x1xf32>
    %68 = vector.broadcast %67 : vector<8x1xf32> to vector<8x8xf32>
    %69 = arith.divf %65, %68 : vector<8x8xf32>
    %cst_28 = arith.constant dense<0.000000e+00> : vector<8x8xf32>
    %70 = tpu.matmul %69, %59, %cst_28 {dimension_numbers = #tpu.dot_dimension_numbers<[1], [0], [0], [1], [0, 0, 1, 1], [], []>} : vector<8x8xf32>, vector<8x8xf32>, vector<8x8xf32> -> vector<8x8xf32>
    %71 = vector.extract_strided_slice %8 {offsets = [0, 24], sizes = [8, 8], strides = [1, 1]} : vector<16x32xf32> to vector<8x8xf32>
    %cst_29 = arith.constant 0.353553385 : f32
    %72 = vector.broadcast %cst_29 : f32 to vector<8x8xf32>
    %73 = arith.mulf %71, %72 : vector<8x8xf32>
    %74 = vector.extract_strided_slice %15 {offsets = [0, 24], sizes = [8, 8], strides = [1, 1]} : vector<16x32xf32> to vector<8x8xf32>
    %75 = vector.extract_strided_slice %22 {offsets = [0, 24], sizes = [8, 8], strides = [1, 1]} : vector<16x32xf32> to vector<8x8xf32>
    %cst_30 = arith.constant dense<0.000000e+00> : vector<8x8xf32>
    %76 = tpu.matmul %73, %74, %cst_30 {dimension_numbers = #tpu.dot_dimension_numbers<[1], [1], [0], [0], [0, 0, 1, 0], [], []>} : vector<8x8xf32>, vector<8x8xf32>, vector<8x8xf32> -> vector<8x8xf32>
    %cst_31 = arith.constant dense<0xFF800000> : vector<8xf32>
    %77 = vector.multi_reduction <maximumf>, %76, %cst_31 [1] : vector<8x8xf32> to vector<8xf32>
    %78 = vector.shape_cast %77 : vector<8xf32> to vector<8x1xf32>
    %79 = vector.broadcast %78 : vector<8x1xf32> to vector<8x8xf32>
    %80 = arith.subf %76, %79 : vector<8x8xf32>
    %81 = math.exp %80 : vector<8x8xf32>
    %cst_32 = arith.constant dense<0.000000e+00> : vector<8xf32>
    %82 = vector.multi_reduction <add>, %81, %cst_32 [1] : vector<8x8xf32> to vector<8xf32>
    %83 = vector.shape_cast %82 : vector<8xf32> to vector<8x1xf32>
    %84 = vector.broadcast %83 : vector<8x1xf32> to vector<8x8xf32>
    %85 = arith.divf %81, %84 : vector<8x8xf32>
    %cst_33 = arith.constant dense<0.000000e+00> : vector<8x8xf32>
    %86 = tpu.matmul %85, %75, %cst_33 {dimension_numbers = #tpu.dot_dimension_numbers<[1], [0], [0], [1], [0, 0, 1, 1], [], []>} : vector<8x8xf32>, vector<8x8xf32>, vector<8x8xf32> -> vector<8x8xf32>
    %87 = tpu.concatenate %38, %54, %70, %86 in 1 : vector<8x8xf32>, vector<8x8xf32>, vector<8x8xf32>, vector<8x8xf32> -> vector<8x32xf32>
    %88 = vector.extract_strided_slice %8 {offsets = [8, 0], sizes = [8, 8], strides = [1, 1]} : vector<16x32xf32> to vector<8x8xf32>
    %cst_34 = arith.constant 0.353553385 : f32
    %89 = vector.broadcast %cst_34 : f32 to vector<8x8xf32>
    %90 = arith.mulf %88, %89 : vector<8x8xf32>
    %91 = vector.extract_strided_slice %15 {offsets = [8, 0], sizes = [8, 8], strides = [1, 1]} : vector<16x32xf32> to vector<8x8xf32>
    %92 = vector.extract_strided_slice %22 {offsets = [8, 0], sizes = [8, 8], strides = [1, 1]} : vector<16x32xf32> to vector<8x8xf32>
    %cst_35 = arith.constant dense<0.000000e+00> : vector<8x8xf32>
    %93 = tpu.matmul %90, %91, %cst_35 {dimension_numbers = #tpu.dot_dimension_numbers<[1], [1], [0], [0], [0, 0, 1, 0], [], []>} : vector<8x8xf32>, vector<8x8xf32>, vector<8x8xf32> -> vector<8x8xf32>
    %cst_36 = arith.constant dense<0xFF800000> : vector<8xf32>
    %94 = vector.multi_reduction <maximumf>, %93, %cst_36 [1] : vector<8x8xf32> to vector<8xf32>
    %95 = vector.shape_cast %94 : vector<8xf32> to vector<8x1xf32>
    %96 = vector.broadcast %95 : vector<8x1xf32> to vector<8x8xf32>
    %97 = arith.subf %93, %96 : vector<8x8xf32>
    %98 = math.exp %97 : vector<8x8xf32>
    %cst_37 = arith.constant dense<0.000000e+00> : vector<8xf32>
    %99 = vector.multi_reduction <add>, %98, %cst_37 [1] : vector<8x8xf32> to vector<8xf32>
    %100 = vector.shape_cast %99 : vector<8xf32> to vector<8x1xf32>
    %101 = vector.broadcast %100 : vector<8x1xf32> to vector<8x8xf32>
    %102 = arith.divf %98, %101 : vector<8x8xf32>
    %cst_38 = arith.constant dense<0.000000e+00> : vector<8x8xf32>
    %103 = tpu.matmul %102, %92, %cst_38 {dimension_numbers = #tpu.dot_dimension_numbers<[1], [0], [0], [1], [0, 0, 1, 1], [], []>} : vector<8x8xf32>, vector<8x8xf32>, vector<8x8xf32> -> vector<8x8xf32>
    %104 = vector.extract_strided_slice %8 {offsets = [8, 8], sizes = [8, 8], strides = [1, 1]} : vector<16x32xf32> to vector<8x8xf32>
    %cst_39 = arith.constant 0.353553385 : f32
    %105 = vector.broadcast %cst_39 : f32 to vector<8x8xf32>
    %106 = arith.mulf %104, %105 : vector<8x8xf32>
    %107 = vector.extract_strided_slice %15 {offsets = [8, 8], sizes = [8, 8], strides = [1, 1]} : vector<16x32xf32> to vector<8x8xf32>
    %108 = vector.extract_strided_slice %22 {offsets = [8, 8], sizes = [8, 8], strides = [1, 1]} : vector<16x32xf32> to vector<8x8xf32>
    %cst_40 = arith.constant dense<0.000000e+00> : vector<8x8xf32>
    %109 = tpu.matmul %106, %107, %cst_40 {dimension_numbers = #tpu.dot_dimension_numbers<[1], [1], [0], [0], [0, 0, 1, 0], [], []>} : vector<8x8xf32>, vector<8x8xf32>, vector<8x8xf32> -> vector<8x8xf32>
    %cst_41 = arith.constant dense<0xFF800000> : vector<8xf32>
    %110 = vector.multi_reduction <maximumf>, %109, %cst_41 [1] : vector<8x8xf32> to vector<8xf32>
    %111 = vector.shape_cast %110 : vector<8xf32> to vector<8x1xf32>
    %112 = vector.broadcast %111 : vector<8x1xf32> to vector<8x8xf32>
    %113 = arith.subf %109, %112 : vector<8x8xf32>
    %114 = math.exp %113 : vector<8x8xf32>
    %cst_42 = arith.constant dense<0.000000e+00> : vector<8xf32>
    %115 = vector.multi_reduction <add>, %114, %cst_42 [1] : vector<8x8xf32> to vector<8xf32>
    %116 = vector.shape_cast %115 : vector<8xf32> to vector<8x1xf32>
    %117 = vector.broadcast %116 : vector<8x1xf32> to vector<8x8xf32>
    %118 = arith.divf %114, %117 : vector<8x8xf32>
    %cst_43 = arith.constant dense<0.000000e+00> : vector<8x8xf32>
    %119 = tpu.matmul %118, %108, %cst_43 {dimension_numbers = #tpu.dot_dimension_numbers<[1], [0], [0], [1], [0, 0, 1, 1], [], []>} : vector<8x8xf32>, vector<8x8xf32>, vector<8x8xf32> -> vector<8x8xf32>
    %120 = vector.extract_strided_slice %8 {offsets = [8, 16], sizes = [8, 8], strides = [1, 1]} : vector<16x32xf32> to vector<8x8xf32>
    %cst_44 = arith.constant 0.353553385 : f32
    %121 = vector.broadcast %cst_44 : f32 to vector<8x8xf32>
    %122 = arith.mulf %120, %121 : vector<8x8xf32>
    %123 = vector.extract_strided_slice %15 {offsets = [8, 16], sizes = [8, 8], strides = [1, 1]} : vector<16x32xf32> to vector<8x8xf32>
    %124 = vector.extract_strided_slice %22 {offsets = [8, 16], sizes = [8, 8], strides = [1, 1]} : vector<16x32xf32> to vector<8x8xf32>
    %cst_45 = arith.constant dense<0.000000e+00> : vector<8x8xf32>
    %125 = tpu.matmul %122, %123, %cst_45 {dimension_numbers = #tpu.dot_dimension_numbers<[1], [1], [0], [0], [0, 0, 1, 0], [], []>} : vector<8x8xf32>, vector<8x8xf32>, vector<8x8xf32> -> vector<8x8xf32>
    %cst_46 = arith.constant dense<0xFF800000> : vector<8xf32>
    %126 = vector.multi_reduction <maximumf>, %125, %cst_46 [1] : vector<8x8xf32> to vector<8xf32>
    %127 = vector.shape_cast %126 : vector<8xf32> to vector<8x1xf32>
    %128 = vector.broadcast %127 : vector<8x1xf32> to vector<8x8xf32>
    %129 = arith.subf %125, %128 : vector<8x8xf32>
    %130 = math.exp %129 : vector<8x8xf32>
    %cst_47 = arith.constant dense<0.000000e+00> : vector<8xf32>
    %131 = vector.multi_reduction <add>, %130, %cst_47 [1] : vector<8x8xf32> to vector<8xf32>
    %132 = vector.shape_cast %131 : vector<8xf32> to vector<8x1xf32>
    %133 = vector.broadcast %132 : vector<8x1xf32> to vector<8x8xf32>
    %134 = arith.divf %130, %133 : vector<8x8xf32>
    %cst_48 = arith.constant dense<0.000000e+00> : vector<8x8xf32>
    %135 = tpu.matmul %134, %124, %cst_48 {dimension_numbers = #tpu.dot_dimension_numbers<[1], [0], [0], [1], [0, 0, 1, 1], [], []>} : vector<8x8xf32>, vector<8x8xf32>, vector<8x8xf32> -> vector<8x8xf32>
    %136 = vector.extract_strided_slice %8 {offsets = [8, 24], sizes = [8, 8], strides = [1, 1]} : vector<16x32xf32> to vector<8x8xf32>
    %cst_49 = arith.constant 0.353553385 : f32
    %137 = vector.broadcast %cst_49 : f32 to vector<8x8xf32>
    %138 = arith.mulf %136, %137 : vector<8x8xf32>
    %139 = vector.extract_strided_slice %15 {offsets = [8, 24], sizes = [8, 8], strides = [1, 1]} : vector<16x32xf32> to vector<8x8xf32>
    %140 = vector.extract_strided_slice %22 {offsets = [8, 24], sizes = [8, 8], strides = [1, 1]} : vector<16x32xf32> to vector<8x8xf32>
    %cst_50 = arith.constant dense<0.000000e+00> : vector<8x8xf32>
    %141 = tpu.matmul %138, %139, %cst_50 {dimension_numbers = #tpu.dot_dimension_numbers<[1], [1], [0], [0], [0, 0, 1, 0], [], []>} : vector<8x8xf32>, vector<8x8xf32>, vector<8x8xf32> -> vector<8x8xf32>
    %cst_51 = arith.constant dense<0xFF800000> : vector<8xf32>
    %142 = vector.multi_reduction <maximumf>, %141, %cst_51 [1] : vector<8x8xf32> to vector<8xf32>
    %143 = vector.shape_cast %142 : vector<8xf32> to vector<8x1xf32>
    %144 = vector.broadcast %143 : vector<8x1xf32> to vector<8x8xf32>
    %145 = arith.subf %141, %144 : vector<8x8xf32>
    %146 = math.exp %145 : vector<8x8xf32>
    %cst_52 = arith.constant dense<0.000000e+00> : vector<8xf32>
    %147 = vector.multi_reduction <add>, %146, %cst_52 [1] : vector<8x8xf32> to vector<8xf32>
    %148 = vector.shape_cast %147 : vector<8xf32> to vector<8x1xf32>
    %149 = vector.broadcast %148 : vector<8x1xf32> to vector<8x8xf32>
    %150 = arith.divf %146, %149 : vector<8x8xf32>
    %cst_53 = arith.constant dense<0.000000e+00> : vector<8x8xf32>
    %151 = tpu.matmul %150, %140, %cst_53 {dimension_numbers = #tpu.dot_dimension_numbers<[1], [0], [0], [1], [0, 0, 1, 1], [], []>} : vector<8x8xf32>, vector<8x8xf32>, vector<8x8xf32> -> vector<8x8xf32>
    %152 = tpu.concatenate %103, %119, %135, %151 in 1 : vector<8x8xf32>, vector<8x8xf32>, vector<8x8xf32>, vector<8x8xf32> -> vector<8x32xf32>
    %153 = tpu.concatenate %87, %152 in 0 : vector<8x32xf32>, vector<8x32xf32> -> vector<16x32xf32>
    %c0_54 = arith.constant 0 : index
    %c0_55 = arith.constant 0 : index
    %154 = vector.load %arg6[%c0_54, %c0_55] : memref<32x32xf32, #tpu.memory_space<vmem>>, vector<32x32xf32>
    %cst_56 = arith.constant dense<0.000000e+00> : vector<16x32xf32>
    %155 = tpu.matmul %153, %154, %cst_56 {dimension_numbers = #tpu.dot_dimension_numbers<[1], [0], [0], [1], [0, 0, 1, 1], [], []>} : vector<16x32xf32>, vector<32x32xf32>, vector<16x32xf32> -> vector<16x32xf32>
    %c0_57 = arith.constant 0 : index
    %c0_58 = arith.constant 0 : index
    %156 = vector.load %arg7[%c0_57, %c0_58] : memref<1x32xf32, #tpu.memory_space<vmem>>, vector<1x32xf32>
    %157 = vector.shape_cast %156 : vector<1x32xf32> to vector<32xf32>
    %158 = vector.shape_cast %157 : vector<32xf32> to vector<1x32xf32>
    %159 = vector.broadcast %158 : vector<1x32xf32> to vector<16x32xf32>
    %160 = arith.addf %155, %159 : vector<16x32xf32>
    %161 = arith.addf %160, %1 : vector<16x32xf32>
    %c0_59 = arith.constant 0 : index
    %c0_60 = arith.constant 0 : index
    %162 = vector.load %arg8[%c0_59, %c0_60] : memref<32x32xf32, #tpu.memory_space<vmem>>, vector<32x32xf32>
    %cst_61 = arith.constant dense<0.000000e+00> : vector<16x32xf32>
    %163 = tpu.matmul %161, %162, %cst_61 {dimension_numbers = #tpu.dot_dimension_numbers<[1], [0], [0], [1], [0, 0, 1, 1], [], []>} : vector<16x32xf32>, vector<32x32xf32>, vector<16x32xf32> -> vector<16x32xf32>
    %c0_62 = arith.constant 0 : index
    %c0_63 = arith.constant 0 : index
    %164 = vector.load %arg9[%c0_62, %c0_63] : memref<32x32xf32, #tpu.memory_space<vmem>>, vector<32x32xf32>
    %cst_64 = arith.constant dense<0.000000e+00> : vector<16x32xf32>
    %165 = tpu.matmul %163, %164, %cst_64 {dimension_numbers = #tpu.dot_dimension_numbers<[1], [0], [0], [1], [0, 0, 1, 1], [], []>} : vector<16x32xf32>, vector<32x32xf32>, vector<16x32xf32> -> vector<16x32xf32>
    %166 = arith.addf %165, %161 : vector<16x32xf32>
    %167 = vector.shape_cast %166 : vector<16x32xf32> to vector<2x8x32xf32>
    %c0_65 = arith.constant 0 : index
    %c0_66 = arith.constant 0 : index
    %c0_67 = arith.constant 0 : index
    %168 = vector.load %arg10[%c0_65, %c0_66, %c0_67] : memref<2x8x32xf32, #tpu.memory_space<vmem>>, vector<2x8x32xf32>
    tpu.vector_store %arg10[%c0_65, %c0_66, %c0_67], %167 {strides = array<i32>} : memref<2x8x32xf32, #tpu.memory_space<vmem>>, vector<2x8x32xf32>,
    return
  }
  func.func @transform_0(%arg0: i32) -> (i32, i32, i32) {
    %c0_i32 = arith.constant 0 : i32
    %c0_i32_0 = arith.constant 0 : i32
    %c0_i32_1 = arith.constant 0 : i32
    return %arg0, %c0_i32, %c0_i32_0 : i32, i32, i32
  }
  func.func @transform_1(%arg0: i32) -> (i32, i32) {
    %c0_i32 = arith.constant 0 : i32
    %c0_i32_0 = arith.constant 0 : i32
    %c0_i32_1 = arith.constant 0 : i32
    return %c0_i32, %c0_i32_0 : i32, i32
  }
  func.func @transform_2(%arg0: i32) -> (i32, i32) {
    %c0_i32 = arith.constant 0 : i32
    %c0_i32_0 = arith.constant 0 : i32
    %c0_i32_1 = arith.constant 0 : i32
    return %c0_i32, %c0_i32_0 : i32, i32
  }
  func.func @transform_3(%arg0: i32) -> (i32, i32) {
    %c0_i32 = arith.constant 0 : i32
    %c0_i32_0 = arith.constant 0 : i32
    %c0_i32_1 = arith.constant 0 : i32
    return %c0_i32, %c0_i32_0 : i32, i32
  }
  func.func @transform_4(%arg0: i32) -> (i32, i32) {
    %c0_i32 = arith.constant 0 : i32
    %c0_i32_0 = arith.constant 0 : i32
    %c0_i32_1 = arith.constant 0 : i32
    return %c0_i32, %c0_i32_0 : i32, i32
  }
  func.func @transform_5(%arg0: i32) -> (i32, i32) {
    %c0_i32 = arith.constant 0 : i32
    %c0_i32_0 = arith.constant 0 : i32
    %c0_i32_1 = arith.constant 0 : i32
    return %c0_i32, %c0_i32_0 : i32, i32
  }
  func.func @transform_6(%arg0: i32) -> (i32, i32) {
    %c0_i32 = arith.constant 0 : i32
    %c0_i32_0 = arith.constant 0 : i32
    %c0_i32_1 = arith.constant 0 : i32
    return %c0_i32, %c0_i32_0 : i32, i32
  }
  func.func @transform_7(%arg0: i32) -> (i32, i32) {
    %c0_i32 = arith.constant 0 : i32
    %c0_i32_0 = arith.constant 0 : i32
    %c0_i32_1 = arith.constant 0 : i32
    return %c0_i32, %c0_i32_0 : i32, i32
  }
  func.func @transform_8(%arg0: i32) -> (i32, i32) {
    %c0_i32 = arith.constant 0 : i32
    %c0_i32_0 = arith.constant 0 : i32
    %c0_i32_1 = arith.constant 0 : i32
    return %c0_i32, %c0_i32_0 : i32, i32
  }
  func.func @transform_9(%arg0: i32) -> (i32, i32, i32) {
    %c0_i32 = arith.constant 0 : i32
    %c0_i32_0 = arith.constant 0 : i32
    %c0_i32_1 = arith.constant 0 : i32
    return %arg0, %c0_i32, %c0_i32_0 : i32, i32, i32
  }
}

</mosaic_0001>

<llo_original>
// kernel: tpu_custom_call.1
$region0: #{tpu_custom_call.1}
  #allocation0 [shape = 'u32[]', space=smem, size = 0x4, offset = 0x4, fixed_abs, tag = 'smem constant byte address 0x4 - core index']
  #allocation1 [shape = 'u32[144,128]{1,0:T(1,128)}', space=vmem, size = 0x12000, scoped, tag = 'internal scratch']
  %s0 = inlined_call_operand.hbm [shape: f32[2,8,32], index: 0, kind: input, shape index: {}]
  %s1 = inlined_call_operand.hbm [shape: f32[32,32], index: 1, kind: input, shape index: {}]
  %s2 = inlined_call_operand.hbm [shape: f32[32,32], index: 2, kind: input, shape index: {}]
  %s3 = inlined_call_operand.hbm [shape: f32[32,32], index: 3, kind: input, shape index: {}]
  %s4 = inlined_call_operand.vmem [shape: f32[3,32], index: 4, kind: input, shape index: {}]
  %s5 = inlined_call_operand.hbm [shape: f32[32,32], index: 5, kind: input, shape index: {}]
  %s6 = inlined_call_operand.vmem [shape: f32[1,32], index: 6, kind: input, shape index: {}]
  %s7 = inlined_call_operand.hbm [shape: f32[32,32], index: 7, kind: input, shape index: {}]
  %s8 = inlined_call_operand.hbm [shape: f32[32,32], index: 8, kind: input, shape index: {}]
  %s9 = inlined_call_operand.hbm [shape: f32[2,8,32], index: 9, kind: output, shape index: {}]
  %s10 = sld [smem:[#allocation0]]
  $region74: #{tpu_custom_call.1} parent=0
    _
  %s12 = ssub.s32 1, %s10
  %s13 = scalar_select 0, %s12, %s10
  $region1: #{tpu_custom_call.1} parent=0
    #allocation2 [shape = 'u8[8192]{0}', space=vmem, size = 0x2000, scoped, tag = 'input window, operand 0, single buffered']
    #allocation3 [shape = 's32[1]{0}', space=sflag, size = 0x4, scoped, tag = 'scoped memory for tpu_custom_call.1']
    #allocation4 [shape = 's32[1]{0}', space=sflag, size = 0x4, scoped, tag = 'scoped memory for tpu_custom_call.1']
    #allocation5 [shape = 'u8[16384]{0}', space=vmem, size = 0x4000, scoped, tag = 'input window, operand 1, single buffered']
    #allocation6 [shape = 's32[1]{0}', space=sflag, size = 0x4, scoped, tag = 'scoped memory for tpu_custom_call.1']
    #allocation7 [shape = 'u8[16384]{0}', space=vmem, size = 0x4000, scoped, tag = 'input window, operand 2, single buffered']
    #allocation8 [shape = 'u8[16384]{0}', space=vmem, size = 0x4000, scoped, tag = 'input window, operand 3, single buffered']
    #allocation9 [shape = 's32[1]{0}', space=sflag, size = 0x4, scoped, tag = 'scoped memory for tpu_custom_call.1']
    #allocation10 [shape = 'u8[16384]{0}', space=vmem, size = 0x4000, scoped, tag = 'input window, operand 5, single buffered']
    #allocation11 [shape = 'u8[16384]{0}', space=vmem, size = 0x4000, scoped, tag = 'input window, operand 7, single buffered']
    #allocation12 [shape = 's32[1]{0}', space=sflag, size = 0x4, scoped, tag = 'scoped memory for tpu_custom_call.1']
    #allocation13 [shape = 'u8[16384]{0}', space=vmem, size = 0x4000, scoped, tag = 'input window, operand 8, single buffered']
    #allocation14 [shape = 'u8[8192]{0}', space=vmem, size = 0x2000, scoped, tag = 'output window, operand 0, single buffered']
    %14 = vsyncpa [#allocation3], 0
    %15 = vsyncpa [#allocation6], 0
    %16 = vsyncpa [#allocation9], 0
    %17 = vsyncpa [#allocation12], 0
    %18 = vsyncpa [#allocation4], 0
    // Predicated region
    $region2: #{tpu_custom_call.1} parent=1 // pred_check
      _
    $region3: #{tpu_custom_call.1} parent=1 // pred_check_branch
      %20 = sbr.rel (0) target = $region5
    $region4: #{tpu_custom_call.1} parent=1 // pred_region
      %s22 = ssub.s32 256, 256
      %23 = vsyncadd [#allocation3], %s22
      %s24 = sshll.u32 [#allocation2], 4
      %s25 = int_to_ptr.vmem [resolvable:$true] %s24
      %30 = dma.hbm_to_vmem [thread:$0]  %s0, 256, %s25, [#allocation3], 128, 128, 8
    $region5: #{tpu_custom_call.1} parent=1 // pred_fallthru
      _
    // Predicated region
    $region6: #{tpu_custom_call.1} parent=1 // pred_check
      _
    $region7: #{tpu_custom_call.1} parent=1 // pred_check_branch
      %32 = sbr.rel (0) target = $region9
    $region8: #{tpu_custom_call.1} parent=1 // pred_region
      %s34 = ssub.s32 512, 512
      %35 = vsyncadd [#allocation6], %s34
      %s36 = sshll.u32 [#allocation5], 4
      %s37 = int_to_ptr.vmem [resolvable:$true] %s36
      %42 = dma.hbm_to_vmem [thread:$0]  %s1, 512, %s37, [#allocation6], 128, 128, 8
    $region9: #{tpu_custom_call.1} parent=1 // pred_fallthru
      _
    // Predicated region
    $region10: #{tpu_custom_call.1} parent=1 // pred_check
      _
    $region11: #{tpu_custom_call.1} parent=1 // pred_check_branch
      %44 = sbr.rel (0) target = $region13
    $region12: #{tpu_custom_call.1} parent=1 // pred_region
      %s46 = ssub.s32 512, 512
      %47 = vsyncadd [#allocation6], %s46
      %s48 = sshll.u32 [#allocation7], 4
      %s49 = int_to_ptr.vmem [resolvable:$true] %s48
      %54 = dma.hbm_to_vmem [thread:$0]  %s2, 512, %s49, [#allocation6], 128, 128, 8
    $region13: #{tpu_custom_call.1} parent=1 // pred_fallthru
      _
    // Predicated region
    $region14: #{tpu_custom_call.1} parent=1 // pred_check
      _
    $region15: #{tpu_custom_call.1} parent=1 // pred_check_branch
      %56 = sbr.rel (0) target = $region17
    $region16: #{tpu_custom_call.1} parent=1 // pred_region
      %s58 = ssub.s32 512, 512
      %59 = vsyncadd [#allocation9], %s58
      %s60 = sshll.u32 [#allocation8], 4
      %s61 = int_to_ptr.vmem [resolvable:$true] %s60
      %66 = dma.hbm_to_vmem [thread:$0]  %s3, 512, %s61, [#allocation9], 128, 128, 8
    $region17: #{tpu_custom_call.1} parent=1 // pred_fallthru
      _
    // Predicated region
    $region18: #{tpu_custom_call.1} parent=1 // pred_check
      _
    $region19: #{tpu_custom_call.1} parent=1 // pred_check_branch
      %68 = sbr.rel (0) target = $region21
    $region20: #{tpu_custom_call.1} parent=1 // pred_region
      _
    $region21: #{tpu_custom_call.1} parent=1 // pred_fallthru
      _
    // Predicated region
    $region22: #{tpu_custom_call.1} parent=1 // pred_check
      _
    $region23: #{tpu_custom_call.1} parent=1 // pred_check_branch
      %70 = sbr.rel (0) target = $region25
    $region24: #{tpu_custom_call.1} parent=1 // pred_region
      %s72 = ssub.s32 512, 512
      %73 = vsyncadd [#allocation9], %s72
      %s74 = sshll.u32 [#allocation10], 4
      %s75 = int_to_ptr.vmem [resolvable:$true] %s74
      %80 = dma.hbm_to_vmem [thread:$0]  %s5, 512, %s75, [#allocation9], 128, 128, 8
    $region25: #{tpu_custom_call.1} parent=1 // pred_fallthru
      _
    // Predicated region
    $region26: #{tpu_custom_call.1} parent=1 // pred_check
      _
    $region27: #{tpu_custom_call.1} parent=1 // pred_check_branch
      %82 = sbr.rel (0) target = $region29
    $region28: #{tpu_custom_call.1} parent=1 // pred_region
      _
    $region29: #{tpu_custom_call.1} parent=1 // pred_fallthru
      _
    // Predicated region
    $region30: #{tpu_custom_call.1} parent=1 // pred_check
      _
    $region31: #{tpu_custom_call.1} parent=1 // pred_check_branch
      %84 = sbr.rel (0) target = $region33
    $region32: #{tpu_custom_call.1} parent=1 // pred_region
      %s86 = ssub.s32 512, 512
      %87 = vsyncadd [#allocation12], %s86
      %s88 = sshll.u32 [#allocation11], 4
      %s89 = int_to_ptr.vmem [resolvable:$true] %s88
      %94 = dma.hbm_to_vmem [thread:$0]  %s7, 512, %s89, [#allocation12], 128, 128, 8
    $region33: #{tpu_custom_call.1} parent=1 // pred_fallthru
      _
    // Predicated region
    $region34: #{tpu_custom_call.1} parent=1 // pred_check
      _
    $region35: #{tpu_custom_call.1} parent=1 // pred_check_branch
      %96 = sbr.rel (0) target = $region37
    $region36: #{tpu_custom_call.1} parent=1 // pred_region
      %s98 = ssub.s32 512, 512
      %99 = vsyncadd [#allocation12], %s98
      %s100 = sshll.u32 [#allocation13], 4
      %s101 = int_to_ptr.vmem [resolvable:$true] %s100
      %106 = dma.hbm_to_vmem [thread:$0]  %s8, 512, %s101, [#allocation12], 128, 128, 8
    $region37: #{tpu_custom_call.1} parent=1 // pred_fallthru
      _
    // Predicated region
    $region38: #{tpu_custom_call.1} parent=1 // pred_check
      _
    $region39: #{tpu_custom_call.1} parent=1 // pred_check_branch
      %108 = sbr.rel (0) target = $region41
    $region40: #{tpu_custom_call.1} parent=1 // pred_region
      %109 = dma.done [#allocation3], 256
    $region41: #{tpu_custom_call.1} parent=1 // pred_fallthru
      _
    // Predicated region
    $region42: #{tpu_custom_call.1} parent=1 // pred_check
      _
    $region43: #{tpu_custom_call.1} parent=1 // pred_check_branch
      %111 = sbr.rel (0) target = $region45
    $region44: #{tpu_custom_call.1} parent=1 // pred_region
      %112 = dma.done [#allocation6], 512
    $region45: #{tpu_custom_call.1} parent=1 // pred_fallthru
      _
    // Predicated region
    $region46: #{tpu_custom_call.1} parent=1 // pred_check
      _
    $region47: #{tpu_custom_call.1} parent=1 // pred_check_branch
      %114 = sbr.rel (0) target = $region49
    $region48: #{tpu_custom_call.1} parent=1 // pred_region
      %115 = dma.done [#allocation6], 512
    $region49: #{tpu_custom_call.1} parent=1 // pred_fallthru
      _
    // Predicated region
    $region50: #{tpu_custom_call.1} parent=1 // pred_check
      _
    $region51: #{tpu_custom_call.1} parent=1 // pred_check_branch
      %117 = sbr.rel (0) target = $region53
    $region52: #{tpu_custom_call.1} parent=1 // pred_region
      %118 = dma.done [#allocation9], 512
    $region53: #{tpu_custom_call.1} parent=1 // pred_fallthru
      _
    // Predicated region
    $region54: #{tpu_custom_call.1} parent=1 // pred_check
      _
    $region55: #{tpu_custom_call.1} parent=1 // pred_check_branch
      %120 = sbr.rel (0) target = $region57
    $region56: #{tpu_custom_call.1} parent=1 // pred_region
      %121 = dma.done [#allocation9], 512
    $region57: #{tpu_custom_call.1} parent=1 // pred_fallthru
      _
    // Predicated region
    $region58: #{tpu_custom_call.1} parent=1 // pred_check
      _
    $region59: #{tpu_custom_call.1} parent=1 // pred_check_branch
      %123 = sbr.rel (0) target = $region61
    $region60: #{tpu_custom_call.1} parent=1 // pred_region
      %124 = dma.done [#allocation12], 512
    $region61: #{tpu_custom_call.1} parent=1 // pred_fallthru
      _
    // Predicated region
    $region62: #{tpu_custom_call.1} parent=1 // pred_check
      _
    $region63: #{tpu_custom_call.1} parent=1 // pred_check_branch
      %126 = sbr.rel (0) target = $region65
    $region64: #{tpu_custom_call.1} parent=1 // pred_region
      %127 = dma.done [#allocation12], 512
    $region65: #{tpu_custom_call.1} parent=1 // pred_fallthru
      _
    %v128 = vld [vmem:[#allocation2] sm:$0xff]
    %v129 = vld [vmem:[#allocation2 + $0x8] sm:$0xff]
    %v130 = vld [vmem:[#allocation5] sm:$0xff]
    %v131 = vld [vmem:[#allocation5 + $0x8] sm:$0xff]
    %v132 = vld [vmem:[#allocation5 + $0x10] sm:$0xff]
    %v133 = vld [vmem:[#allocation5 + $0x18] sm:$0xff]
    %v134 = vld [vmem:[%s4] sm:$0x1]
    %v135 = vlaneseq
    %v136 = vshrl.u32 %v135, 7
    %v137 = vsub.s32 0, %v136
    %v138 = vrot.slane %v134, %v137
    %vm139 = vcmask 261120
    %v141 = vsel %vm139, %v128, 0
    %v144 = vsel %vm139, %v129, 0
    %146 = vmatprep.subr.mxu0 0.0
    %147 = vmatpush1.msra.mxu0 0.0
    %148 = vmatprep.subr.mxu0 0.0
    %149 = vmatpush1.msra.mxu0 0.0
    %150 = vmatprep.subr.mxu0 0.0
    %151 = vmatpush1.msra.mxu0 0.0
    %152 = vmatprep.subr.mxu0 0.0
    %153 = vmatpush1.msra.mxu0 0.0
    %154 = vmatprep.subr.mxu0 0.0
    %155 = vmatpush1.msra.mxu0 0.0
    %156 = vmatprep.subr.mxu0 0.0
    %157 = vmatpush1.msra.mxu0 0.0
    %158 = vmatprep.subr.mxu0 0.0
    %159 = vmatpush1.msra.mxu0 0.0
    %160 = vmatprep.subr.mxu0 0.0
    %161 = vmatpush1.msra.mxu0 0.0
    %162 = vmatprep.subr.mxu0 0.0
    %163 = vmatpush1.msra.mxu0 0.0
    %164 = vmatprep.subr.mxu0 0.0
    %165 = vmatpush1.msra.mxu0 0.0
    %166 = vmatprep.subr.mxu0 0.0
    %167 = vmatpush1.msra.mxu0 0.0
    %168 = vmatprep.subr.mxu0 0.0
    %169 = vmatpush1.msra.mxu0 0.0
    %170 = vmatprep.subr.mxu0 0.0
    %171 = vmatpush1.msra.mxu0 %v133
    %172 = vmatprep.subr.mxu0 0.0
    %173 = vmatpush1.msra.mxu0 %v132
    %174 = vmatprep.subr.mxu0 0.0
    %175 = vmatpush1.msra.mxu0 %v131
    %176 = vmatprep.subr.mxu0 0.0
    %177 = vmatpush1.msra.mxu0 %v130
    %178 = vmatprep.subr.mxu0 0.0
    %179 = vmatpush2.msra.mxu0 0.0
    %180 = vmatprep.subr.mxu0 0.0
    %181 = vmatpush2.msra.mxu0 0.0
    %182 = vmatprep.subr.mxu0 0.0
    %183 = vmatpush2.msra.mxu0 0.0
    %184 = vmatprep.subr.mxu0 0.0
    %185 = vmatpush2.msra.mxu0 0.0
    %186 = vmatprep.subr.mxu0 0.0
    %187 = vmatpush2.msra.mxu0 0.0
    %188 = vmatprep.subr.mxu0 0.0
    %189 = vmatpush2.msra.mxu0 0.0
    %190 = vmatprep.subr.mxu0 0.0
    %191 = vmatpush2.msra.mxu0 0.0
    %192 = vmatprep.subr.mxu0 0.0
    %193 = vmatpush2.msra.mxu0 0.0
    %194 = vmatprep.subr.mxu0 0.0
    %195 = vmatpush2.msra.mxu0 0.0
    %196 = vmatprep.subr.mxu0 0.0
    %197 = vmatpush2.msra.mxu0 0.0
    %198 = vmatprep.subr.mxu0 0.0
    %199 = vmatpush2.msra.mxu0 0.0
    %200 = vmatprep.subr.mxu0 0.0
    %201 = vmatpush2.msra.mxu0 0.0
    %202 = vmatprep.subr.mxu0 0.0
    %203 = vmatpush2.msra.mxu0 0.0
    %204 = vmatprep.subr.mxu0 0.0
    %205 = vmatpush2.msra.mxu0 0.0
    %206 = vmatprep.subr.mxu0 0.0
    %207 = vmatpush2.msra.mxu0 0.0
    %208 = vmatprep.subr.mxu0 0.0
    %209 = vmatpush2.msra.mxu0 0.0
    %210 = vmatprep.mubr.f32.mxu0 0.0
    %211 = vmatmul.mubr.f32.gmra.mxu0 %v141
    %v212 = vpop.f32.mrf.mxu0
    %v213 = vadd.f32 %v138, %v212
    %v214 = vpop.f32.mrf.mxu0
    %215 = vmatprep.mubr.f32.mxu0 0.0
    %216 = vmatmul.mubr.f32.gmra.mxu0 %v144
    %v217 = vpop.f32.mrf.mxu0
    %v218 = vadd.f32 %v138, %v217
    %v219 = vpop.f32.mrf.mxu0
    %220 = vdwg.mxu0
    %v221 = vld [vmem:[#allocation7] sm:$0xff]
    %v222 = vld [vmem:[#allocation7 + $0x8] sm:$0xff]
    %v223 = vld [vmem:[#allocation7 + $0x10] sm:$0xff]
    %v224 = vld [vmem:[#allocation7 + $0x18] sm:$0xff]
    %v225 = vld [vmem:[%s4 + $0x1] sm:$0x1]
    %v226 = vlaneseq
    %v227 = vshrl.u32 %v226, 7
    %v228 = vsub.s32 0, %v227
    %v229 = vrot.slane %v225, %v228
    %230 = vmatprep.subr.mxu0 0.0
    %231 = vmatpush1.msra.mxu0 0.0
    %232 = vmatprep.subr.mxu0 0.0
    %233 = vmatpush1.msra.mxu0 0.0
    %234 = vmatprep.subr.mxu0 0.0
    %235 = vmatpush1.msra.mxu0 0.0
    %236 = vmatprep.subr.mxu0 0.0
    %237 = vmatpush1.msra.mxu0 0.0
    %238 = vmatprep.subr.mxu0 0.0
    %239 = vmatpush1.msra.mxu0 0.0
    %240 = vmatprep.subr.mxu0 0.0
    %241 = vmatpush1.msra.mxu0 0.0
    %242 = vmatprep.subr.mxu0 0.0
    %243 = vmatpush1.msra.mxu0 0.0
    %244 = vmatprep.subr.mxu0 0.0
    %245 = vmatpush1.msra.mxu0 0.0
    %246 = vmatprep.subr.mxu0 0.0
    %247 = vmatpush1.msra.mxu0 0.0
    %248 = vmatprep.subr.mxu0 0.0
    %249 = vmatpush1.msra.mxu0 0.0
    %250 = vmatprep.subr.mxu0 0.0
    %251 = vmatpush1.msra.mxu0 0.0
    %252 = vmatprep.subr.mxu0 0.0
    %253 = vmatpush1.msra.mxu0 0.0
    %254 = vmatprep.subr.mxu0 0.0
    %255 = vmatpush1.msra.mxu0 %v224
    %256 = vmatprep.subr.mxu0 0.0
    %257 = vmatpush1.msra.mxu0 %v223
    %258 = vmatprep.subr.mxu0 0.0
    %259 = vmatpush1.msra.mxu0 %v222
    %260 = vmatprep.subr.mxu0 0.0
    %261 = vmatpush1.msra.mxu0 %v221
    %262 = vmatprep.subr.mxu0 0.0
    %263 = vmatpush2.msra.mxu0 0.0
    %264 = vmatprep.subr.mxu0 0.0
    %265 = vmatpush2.msra.mxu0 0.0
    %266 = vmatprep.subr.mxu0 0.0
    %267 = vmatpush2.msra.mxu0 0.0
    %268 = vmatprep.subr.mxu0 0.0
    %269 = vmatpush2.msra.mxu0 0.0
    %270 = vmatprep.subr.mxu0 0.0
    %271 = vmatpush2.msra.mxu0 0.0
    %272 = vmatprep.subr.mxu0 0.0
    %273 = vmatpush2.msra.mxu0 0.0
    %274 = vmatprep.subr.mxu0 0.0
    %275 = vmatpush2.msra.mxu0 0.0
    %276 = vmatprep.subr.mxu0 0.0
    %277 = vmatpush2.msra.mxu0 0.0
    %278 = vmatprep.subr.mxu0 0.0
    %279 = vmatpush2.msra.mxu0 0.0
    %280 = vmatprep.subr.mxu0 0.0
    %281 = vmatpush2.msra.mxu0 0.0
    %282 = vmatprep.subr.mxu0 0.0
    %283 = vmatpush2.msra.mxu0 0.0
    %284 = vmatprep.subr.mxu0 0.0
    %285 = vmatpush2.msra.mxu0 0.0
    %286 = vmatprep.subr.mxu0 0.0
    %287 = vmatpush2.msra.mxu0 0.0
    %288 = vmatprep.subr.mxu0 0.0
    %289 = vmatpush2.msra.mxu0 0.0
    %290 = vmatprep.subr.mxu0 0.0
    %291 = vmatpush2.msra.mxu0 0.0
    %292 = vmatprep.subr.mxu0 0.0
    %293 = vmatpush2.msra.mxu0 0.0
    %294 = vmatprep.mubr.f32.mxu0 0.0
    %295 = vmatmul.mubr.f32.gmra.mxu0 %v141
    %v296 = vpop.f32.mrf.mxu0
    %v297 = vadd.f32 %v229, %v296
    %v298 = vpop.f32.mrf.mxu0
    %299 = vmatprep.mubr.f32.mxu0 0.0
    %300 = vmatmul.mubr.f32.gmra.mxu0 %v144
    %v301 = vpop.f32.mrf.mxu0
    %v302 = vadd.f32 %v229, %v301
    %v303 = vpop.f32.mrf.mxu0
    %304 = vdwg.mxu0
    %v305 = vld [vmem:[#allocation8] sm:$0xff]
    %v306 = vld [vmem:[#allocation8 + $0x8] sm:$0xff]
    %v307 = vld [vmem:[#allocation8 + $0x10] sm:$0xff]
    %v308 = vld [vmem:[#allocation8 + $0x18] sm:$0xff]
    %v309 = vld [vmem:[%s4 + $0x2] sm:$0x1]
    %v310 = vlaneseq
    %v311 = vshrl.u32 %v310, 7
    %v312 = vsub.s32 0, %v311
    %v313 = vrot.slane %v309, %v312
    %314 = vmatprep.subr.mxu0 0.0
    %315 = vmatpush1.msra.mxu0 0.0
    %316 = vmatprep.subr.mxu0 0.0
    %317 = vmatpush1.msra.mxu0 0.0
    %318 = vmatprep.subr.mxu0 0.0
    %319 = vmatpush1.msra.mxu0 0.0
    %320 = vmatprep.subr.mxu0 0.0
    %321 = vmatpush1.msra.mxu0 0.0
    %322 = vmatprep.subr.mxu0 0.0
    %323 = vmatpush1.msra.mxu0 0.0
    %324 = vmatprep.subr.mxu0 0.0
    %325 = vmatpush1.msra.mxu0 0.0
    %326 = vmatprep.subr.mxu0 0.0
    %327 = vmatpush1.msra.mxu0 0.0
    %328 = vmatprep.subr.mxu0 0.0
    %329 = vmatpush1.msra.mxu0 0.0
    %330 = vmatprep.subr.mxu0 0.0
    %331 = vmatpush1.msra.mxu0 0.0
    %332 = vmatprep.subr.mxu0 0.0
    %333 = vmatpush1.msra.mxu0 0.0
    %334 = vmatprep.subr.mxu0 0.0
    %335 = vmatpush1.msra.mxu0 0.0
    %336 = vmatprep.subr.mxu0 0.0
    %337 = vmatpush1.msra.mxu0 0.0
    %338 = vmatprep.subr.mxu0 0.0
    %339 = vmatpush1.msra.mxu0 %v308
    %340 = vmatprep.subr.mxu0 0.0
    %341 = vmatpush1.msra.mxu0 %v307
    %342 = vmatprep.subr.mxu0 0.0
    %343 = vmatpush1.msra.mxu0 %v306
    %344 = vmatprep.subr.mxu0 0.0
    %345 = vmatpush1.msra.mxu0 %v305
    %346 = vmatprep.subr.mxu0 0.0
    %347 = vmatpush2.msra.mxu0 0.0
    %348 = vmatprep.subr.mxu0 0.0
    %349 = vmatpush2.msra.mxu0 0.0
    %350 = vmatprep.subr.mxu0 0.0
    %351 = vmatpush2.msra.mxu0 0.0
    %352 = vmatprep.subr.mxu0 0.0
    %353 = vmatpush2.msra.mxu0 0.0
    %354 = vmatprep.subr.mxu0 0.0
    %355 = vmatpush2.msra.mxu0 0.0
    %356 = vmatprep.subr.mxu0 0.0
    %357 = vmatpush2.msra.mxu0 0.0
    %358 = vmatprep.subr.mxu0 0.0
    %359 = vmatpush2.msra.mxu0 0.0
    %360 = vmatprep.subr.mxu0 0.0
    %361 = vmatpush2.msra.mxu0 0.0
    %362 = vmatprep.subr.mxu0 0.0
    %363 = vmatpush2.msra.mxu0 0.0
    %364 = vmatprep.subr.mxu0 0.0
    %365 = vmatpush2.msra.mxu0 0.0
    %366 = vmatprep.subr.mxu0 0.0
    %367 = vmatpush2.msra.mxu0 0.0
    %368 = vmatprep.subr.mxu0 0.0
    %369 = vmatpush2.msra.mxu0 0.0
    %370 = vmatprep.subr.mxu0 0.0
    %371 = vmatpush2.msra.mxu0 0.0
    %372 = vmatprep.subr.mxu0 0.0
    %373 = vmatpush2.msra.mxu0 0.0
    %374 = vmatprep.subr.mxu0 0.0
    %375 = vmatpush2.msra.mxu0 0.0
    %376 = vmatprep.subr.mxu0 0.0
    %377 = vmatpush2.msra.mxu0 0.0
    %378 = vmatprep.mubr.f32.mxu0 0.0
    %379 = vmatmul.mubr.f32.gmra.mxu0 %v141
    %v380 = vpop.f32.mrf.mxu0
    %v381 = vadd.f32 %v313, %v380
    %v382 = vpop.f32.mrf.mxu0
    %383 = vmatprep.mubr.f32.mxu0 0.0
    %384 = vmatmul.mubr.f32.gmra.mxu0 %v144
    %v385 = vpop.f32.mrf.mxu0
    %v386 = vadd.f32 %v313, %v385
    %v387 = vpop.f32.mrf.mxu0
    %388 = vdwg.mxu0
    %v389 = vmul.f32 %v213, 0.35355338
    %vm390 = vcmask 64512
    %v392 = vsel %vm390, %v389, 0
    %v395 = vsel %vm390, %v297, 0
    %397 = vmatprep.subr.mxu0 0.0
    %398 = vmatpush1.xpose.msra.mxu0 0.0
    %399 = vmatprep.subr.mxu0 0.0
    %400 = vmatpush1.xpose.msra.mxu0 0.0
    %401 = vmatprep.subr.mxu0 0.0
    %402 = vmatpush1.xpose.msra.mxu0 0.0
    %403 = vmatprep.subr.mxu0 0.0
    %404 = vmatpush1.xpose.msra.mxu0 0.0
    %405 = vmatprep.subr.mxu0 0.0
    %406 = vmatpush1.xpose.msra.mxu0 0.0
    %407 = vmatprep.subr.mxu0 0.0
    %408 = vmatpush1.xpose.msra.mxu0 0.0
    %409 = vmatprep.subr.mxu0 0.0
    %410 = vmatpush1.xpose.msra.mxu0 0.0
    %411 = vmatprep.subr.mxu0 0.0
    %412 = vmatpush1.xpose.msra.mxu0 0.0
    %413 = vmatprep.subr.mxu0 0.0
    %414 = vmatpush1.xpose.msra.mxu0 0.0
    %415 = vmatprep.subr.mxu0 0.0
    %416 = vmatpush1.xpose.msra.mxu0 0.0
    %417 = vmatprep.subr.mxu0 0.0
    %418 = vmatpush1.xpose.msra.mxu0 0.0
    %419 = vmatprep.subr.mxu0 0.0
    %420 = vmatpush1.xpose.msra.mxu0 0.0
    %421 = vmatprep.subr.mxu0 0.0
    %422 = vmatpush1.xpose.msra.mxu0 0.0
    %423 = vmatprep.subr.mxu0 0.0
    %424 = vmatpush1.xpose.msra.mxu0 0.0
    %425 = vmatprep.subr.mxu0 0.0
    %426 = vmatpush1.xpose.msra.mxu0 0.0
    %427 = vmatprep.subr.mxu0 0.0
    %428 = vmatpush1.xpose.msra.mxu0 %v395
    %429 = vmatprep.subr.mxu0 0.0
    %430 = vmatpush2.xpose.msra.mxu0 0.0
    %431 = vmatprep.subr.mxu0 0.0
    %432 = vmatpush2.xpose.msra.mxu0 0.0
    %433 = vmatprep.subr.mxu0 0.0
    %434 = vmatpush2.xpose.msra.mxu0 0.0
    %435 = vmatprep.subr.mxu0 0.0
    %436 = vmatpush2.xpose.msra.mxu0 0.0
    %437 = vmatprep.subr.mxu0 0.0
    %438 = vmatpush2.xpose.msra.mxu0 0.0
    %439 = vmatprep.subr.mxu0 0.0
    %440 = vmatpush2.xpose.msra.mxu0 0.0
    %441 = vmatprep.subr.mxu0 0.0
    %442 = vmatpush2.xpose.msra.mxu0 0.0
    %443 = vmatprep.subr.mxu0 0.0
    %444 = vmatpush2.xpose.msra.mxu0 0.0
    %445 = vmatprep.subr.mxu0 0.0
    %446 = vmatpush2.xpose.msra.mxu0 0.0
    %447 = vmatprep.subr.mxu0 0.0
    %448 = vmatpush2.xpose.msra.mxu0 0.0
    %449 = vmatprep.subr.mxu0 0.0
    %450 = vmatpush2.xpose.msra.mxu0 0.0
    %451 = vmatprep.subr.mxu0 0.0
    %452 = vmatpush2.xpose.msra.mxu0 0.0
    %453 = vmatprep.subr.mxu0 0.0
    %454 = vmatpush2.xpose.msra.mxu0 0.0
    %455 = vmatprep.subr.mxu0 0.0
    %456 = vmatpush2.xpose.msra.mxu0 0.0
    %457 = vmatprep.subr.mxu0 0.0
    %458 = vmatpush2.xpose.msra.mxu0 0.0
    %459 = vmatprep.subr.mxu0 0.0
    %460 = vmatpush2.xpose.msra.mxu0 0.0
    %461 = vmatprep.mubr.f32.mxu0 0.0
    %462 = vmatmul.mubr.f32.gmra.mxu0 %v392
    %v463 = vpop.f32.mrf.mxu0
    %v464 = vadd.f32 0.0, %v463
    %v465 = vpop.f32.mrf.mxu0
    %466 = vdwg.mxu0
    %v467 = vsel %vm390, %v464, -inf
    %468 = vmax.xlane.f32.xlu0 %v467
    %v469 = vpop.xlane.xlu0 %468
    %v470 = vsub.f32 %v464, %v469
    %v471 = vmul.f32 %v470, 1.442695
    %v472 = vpow.pop %v471
    %v473 = vsel %vm390, %v472, 0.0
    %474 = vadd.xlane.f32.xlu0 %v473
    %v475 = vpop.xlane.xlu0 %474
    %v476 = vrcp.pop %v475
    %v477 = vmul.f32 %v472, %v476
    %v479 = vsel %vm390, %v477, 0
    %481 = vmatprep.subr.mxu0 0.0
    %482 = vmatpush1.msra.mxu0 0.0
    %483 = vmatprep.subr.mxu0 0.0
    %484 = vmatpush1.msra.mxu0 0.0
    %485 = vmatprep.subr.mxu0 0.0
    %486 = vmatpush1.msra.mxu0 0.0
    %487 = vmatprep.subr.mxu0 0.0
    %488 = vmatpush1.msra.mxu0 0.0
    %489 = vmatprep.subr.mxu0 0.0
    %490 = vmatpush1.msra.mxu0 0.0
    %491 = vmatprep.subr.mxu0 0.0
    %492 = vmatpush1.msra.mxu0 0.0
    %493 = vmatprep.subr.mxu0 0.0
    %494 = vmatpush1.msra.mxu0 0.0
    %495 = vmatprep.subr.mxu0 0.0
    %496 = vmatpush1.msra.mxu0 0.0
    %497 = vmatprep.subr.mxu0 0.0
    %498 = vmatpush1.msra.mxu0 0.0
    %499 = vmatprep.subr.mxu0 0.0
    %500 = vmatpush1.msra.mxu0 0.0
    %501 = vmatprep.subr.mxu0 0.0
    %502 = vmatpush1.msra.mxu0 0.0
    %503 = vmatprep.subr.mxu0 0.0
    %504 = vmatpush1.msra.mxu0 0.0
    %505 = vmatprep.subr.mxu0 0.0
    %506 = vmatpush1.msra.mxu0 0.0
    %507 = vmatprep.subr.mxu0 0.0
    %508 = vmatpush1.msra.mxu0 0.0
    %509 = vmatprep.subr.mxu0 0.0
    %510 = vmatpush1.msra.mxu0 0.0
    %511 = vmatprep.subr.mxu0 0.0
    %512 = vmatpush1.msra.mxu0 %v381
    %513 = vmatprep.subr.mxu0 0.0
    %514 = vmatpush2.msra.mxu0 0.0
    %515 = vmatprep.subr.mxu0 0.0
    %516 = vmatpush2.msra.mxu0 0.0
    %517 = vmatprep.subr.mxu0 0.0
    %518 = vmatpush2.msra.mxu0 0.0
    %519 = vmatprep.subr.mxu0 0.0
    %520 = vmatpush2.msra.mxu0 0.0
    %521 = vmatprep.subr.mxu0 0.0
    %522 = vmatpush2.msra.mxu0 0.0
    %523 = vmatprep.subr.mxu0 0.0
    %524 = vmatpush2.msra.mxu0 0.0
    %525 = vmatprep.subr.mxu0 0.0
    %526 = vmatpush2.msra.mxu0 0.0
    %527 = vmatprep.subr.mxu0 0.0
    %528 = vmatpush2.msra.mxu0 0.0
    %529 = vmatprep.subr.mxu0 0.0
    %530 = vmatpush2.msra.mxu0 0.0
    %531 = vmatprep.subr.mxu0 0.0
    %532 = vmatpush2.msra.mxu0 0.0
    %533 = vmatprep.subr.mxu0 0.0
    %534 = vmatpush2.msra.mxu0 0.0
    %535 = vmatprep.subr.mxu0 0.0
    %536 = vmatpush2.msra.mxu0 0.0
    %537 = vmatprep.subr.mxu0 0.0
    %538 = vmatpush2.msra.mxu0 0.0
    %539 = vmatprep.subr.mxu0 0.0
    %540 = vmatpush2.msra.mxu0 0.0
    %541 = vmatprep.subr.mxu0 0.0
    %542 = vmatpush2.msra.mxu0 0.0
    %543 = vmatprep.subr.mxu0 0.0
    %544 = vmatpush2.msra.mxu0 0.0
    %545 = vmatprep.mubr.f32.mxu0 0.0
    %546 = vmatmul.mubr.f32.gmra.mxu0 %v479
    %v547 = vpop.f32.mrf.mxu0
    %v548 = vadd.f32 0.0, %v547
    %v549 = vpop.f32.mrf.mxu0
    %550 = vdwg.mxu0
    %551 = vrot.lane.b32.xlu0 %v389, 120
    %v552 = vpop.permute.xlu0 %551
    %553 = vrot.lane.b32.xlu0 %v297, 120
    %v554 = vpop.permute.xlu0 %553
    %v555 = vsel %vm390, %v552, 0
    %v557 = vsel %vm390, %v554, 0
    %559 = vmatprep.subr.mxu0 0.0
    %560 = vmatpush1.xpose.msra.mxu0 0.0
    %561 = vmatprep.subr.mxu0 0.0
    %562 = vmatpush1.xpose.msra.mxu0 0.0
    %563 = vmatprep.subr.mxu0 0.0
    %564 = vmatpush1.xpose.msra.mxu0 0.0
    %565 = vmatprep.subr.mxu0 0.0
    %566 = vmatpush1.xpose.msra.mxu0 0.0
    %567 = vmatprep.subr.mxu0 0.0
    %568 = vmatpush1.xpose.msra.mxu0 0.0
    %569 = vmatprep.subr.mxu0 0.0
    %570 = vmatpush1.xpose.msra.mxu0 0.0
    %571 = vmatprep.subr.mxu0 0.0
    %572 = vmatpush1.xpose.msra.mxu0 0.0
    %573 = vmatprep.subr.mxu0 0.0
    %574 = vmatpush1.xpose.msra.mxu0 0.0
    %575 = vmatprep.subr.mxu0 0.0
    %576 = vmatpush1.xpose.msra.mxu0 0.0
    %577 = vmatprep.subr.mxu0 0.0
    %578 = vmatpush1.xpose.msra.mxu0 0.0
    %579 = vmatprep.subr.mxu0 0.0
    %580 = vmatpush1.xpose.msra.mxu0 0.0
    %581 = vmatprep.subr.mxu0 0.0
    %582 = vmatpush1.xpose.msra.mxu0 0.0
    %583 = vmatprep.subr.mxu0 0.0
    %584 = vmatpush1.xpose.msra.mxu0 0.0
    %585 = vmatprep.subr.mxu0 0.0
    %586 = vmatpush1.xpose.msra.mxu0 0.0
    %587 = vmatprep.subr.mxu0 0.0
    %588 = vmatpush1.xpose.msra.mxu0 0.0
    %589 = vmatprep.subr.mxu0 0.0
    %590 = vmatpush1.xpose.msra.mxu0 %v557
    %591 = vmatprep.subr.mxu0 0.0
    %592 = vmatpush2.xpose.msra.mxu0 0.0
    %593 = vmatprep.subr.mxu0 0.0
    %594 = vmatpush2.xpose.msra.mxu0 0.0
    %595 = vmatprep.subr.mxu0 0.0
    %596 = vmatpush2.xpose.msra.mxu0 0.0
    %597 = vmatprep.subr.mxu0 0.0
    %598 = vmatpush2.xpose.msra.mxu0 0.0
    %599 = vmatprep.subr.mxu0 0.0
    %600 = vmatpush2.xpose.msra.mxu0 0.0
    %601 = vmatprep.subr.mxu0 0.0
    %602 = vmatpush2.xpose.msra.mxu0 0.0
    %603 = vmatprep.subr.mxu0 0.0
    %604 = vmatpush2.xpose.msra.mxu0 0.0
    %605 = vmatprep.subr.mxu0 0.0
    %606 = vmatpush2.xpose.msra.mxu0 0.0
    %607 = vmatprep.subr.mxu0 0.0
    %608 = vmatpush2.xpose.msra.mxu0 0.0
    %609 = vmatprep.subr.mxu0 0.0
    %610 = vmatpush2.xpose.msra.mxu0 0.0
    %611 = vmatprep.subr.mxu0 0.0
    %612 = vmatpush2.xpose.msra.mxu0 0.0
    %613 = vmatprep.subr.mxu0 0.0
    %614 = vmatpush2.xpose.msra.mxu0 0.0
    %615 = vmatprep.subr.mxu0 0.0
    %616 = vmatpush2.xpose.msra.mxu0 0.0
    %617 = vmatprep.subr.mxu0 0.0
    %618 = vmatpush2.xpose.msra.mxu0 0.0
    %619 = vmatprep.subr.mxu0 0.0
    %620 = vmatpush2.xpose.msra.mxu0 0.0
    %621 = vmatprep.subr.mxu0 0.0
    %622 = vmatpush2.xpose.msra.mxu0 0.0
    %623 = vmatprep.mubr.f32.mxu0 0.0
    %624 = vmatmul.mubr.f32.gmra.mxu0 %v555
    %v625 = vpop.f32.mrf.mxu0
    %v626 = vadd.f32 0.0, %v625
    %v627 = vpop.f32.mrf.mxu0
    %628 = vdwg.mxu0
    %v629 = vsel %vm390, %v626, -inf
    %630 = vmax.xlane.f32.xlu0 %v629
    %v631 = vpop.xlane.xlu0 %630
    %v632 = vsub.f32 %v626, %v631
    %v633 = vmul.f32 %v632, 1.442695
    %v634 = vpow.pop %v633
    %v635 = vsel %vm390, %v634, 0.0
    %636 = vadd.xlane.f32.xlu0 %v635
    %v637 = vpop.xlane.xlu0 %636
    %v638 = vrcp.pop %v637
    %v639 = vmul.f32 %v634, %v638
    %641 = vrot.lane.b32.xlu0 %v381, 120
    %v642 = vpop.permute.xlu0 %641
    %v645 = vsel %vm390, %v639, 0
    %647 = vmatprep.subr.mxu0 0.0
    %648 = vmatpush1.msra.mxu0 0.0
    %649 = vmatprep.subr.mxu0 0.0
    %650 = vmatpush1.msra.mxu0 0.0
    %651 = vmatprep.subr.mxu0 0.0
    %652 = vmatpush1.msra.mxu0 0.0
    %653 = vmatprep.subr.mxu0 0.0
    %654 = vmatpush1.msra.mxu0 0.0
    %655 = vmatprep.subr.mxu0 0.0
    %656 = vmatpush1.msra.mxu0 0.0
    %657 = vmatprep.subr.mxu0 0.0
    %658 = vmatpush1.msra.mxu0 0.0
    %659 = vmatprep.subr.mxu0 0.0
    %660 = vmatpush1.msra.mxu0 0.0
    %661 = vmatprep.subr.mxu0 0.0
    %662 = vmatpush1.msra.mxu0 0.0
    %663 = vmatprep.subr.mxu0 0.0
    %664 = vmatpush1.msra.mxu0 0.0
    %665 = vmatprep.subr.mxu0 0.0
    %666 = vmatpush1.msra.mxu0 0.0
    %667 = vmatprep.subr.mxu0 0.0
    %668 = vmatpush1.msra.mxu0 0.0
    %669 = vmatprep.subr.mxu0 0.0
    %670 = vmatpush1.msra.mxu0 0.0
    %671 = vmatprep.subr.mxu0 0.0
    %672 = vmatpush1.msra.mxu0 0.0
    %673 = vmatprep.subr.mxu0 0.0
    %674 = vmatpush1.msra.mxu0 0.0
    %675 = vmatprep.subr.mxu0 0.0
    %676 = vmatpush1.msra.mxu0 0.0
    %677 = vmatprep.subr.mxu0 0.0
    %678 = vmatpush1.msra.mxu0 %v642
    %679 = vmatprep.subr.mxu0 0.0
    %680 = vmatpush2.msra.mxu0 0.0
    %681 = vmatprep.subr.mxu0 0.0
    %682 = vmatpush2.msra.mxu0 0.0
    %683 = vmatprep.subr.mxu0 0.0
    %684 = vmatpush2.msra.mxu0 0.0
    %685 = vmatprep.subr.mxu0 0.0
    %686 = vmatpush2.msra.mxu0 0.0
    %687 = vmatprep.subr.mxu0 0.0
    %688 = vmatpush2.msra.mxu0 0.0
    %689 = vmatprep.subr.mxu0 0.0
    %690 = vmatpush2.msra.mxu0 0.0
    %691 = vmatprep.subr.mxu0 0.0
    %692 = vmatpush2.msra.mxu0 0.0
    %693 = vmatprep.subr.mxu0 0.0
    %694 = vmatpush2.msra.mxu0 0.0
    %695 = vmatprep.subr.mxu0 0.0
    %696 = vmatpush2.msra.mxu0 0.0
    %697 = vmatprep.subr.mxu0 0.0
    %698 = vmatpush2.msra.mxu0 0.0
    %699 = vmatprep.subr.mxu0 0.0
    %700 = vmatpush2.msra.mxu0 0.0
    %701 = vmatprep.subr.mxu0 0.0
    %702 = vmatpush2.msra.mxu0 0.0
    %703 = vmatprep.subr.mxu0 0.0
    %704 = vmatpush2.msra.mxu0 0.0
    %705 = vmatprep.subr.mxu0 0.0
    %706 = vmatpush2.msra.mxu0 0.0
    %707 = vmatprep.subr.mxu0 0.0
    %708 = vmatpush2.msra.mxu0 0.0
    %709 = vmatprep.subr.mxu0 0.0
    %710 = vmatpush2.msra.mxu0 0.0
    %711 = vmatprep.mubr.f32.mxu0 0.0
    %712 = vmatmul.mubr.f32.gmra.mxu0 %v645
    %v713 = vpop.f32.mrf.mxu0
    %v714 = vadd.f32 0.0, %v713
    %v715 = vpop.f32.mrf.mxu0
    %716 = vdwg.mxu0
    %717 = vrot.lane.b32.xlu0 %v389, 112
    %v718 = vpop.permute.xlu0 %717
    %719 = vrot.lane.b32.xlu0 %v297, 112
    %v720 = vpop.permute.xlu0 %719
    %v721 = vsel %vm390, %v718, 0
    %v723 = vsel %vm390, %v720, 0
    %725 = vmatprep.subr.mxu0 0.0
    %726 = vmatpush1.xpose.msra.mxu0 0.0
    %727 = vmatprep.subr.mxu0 0.0
    %728 = vmatpush1.xpose.msra.mxu0 0.0
    %729 = vmatprep.subr.mxu0 0.0
    %730 = vmatpush1.xpose.msra.mxu0 0.0
    %731 = vmatprep.subr.mxu0 0.0
    %732 = vmatpush1.xpose.msra.mxu0 0.0
    %733 = vmatprep.subr.mxu0 0.0
    %734 = vmatpush1.xpose.msra.mxu0 0.0
    %735 = vmatprep.subr.mxu0 0.0
    %736 = vmatpush1.xpose.msra.mxu0 0.0
    %737 = vmatprep.subr.mxu0 0.0
    %738 = vmatpush1.xpose.msra.mxu0 0.0
    %739 = vmatprep.subr.mxu0 0.0
    %740 = vmatpush1.xpose.msra.mxu0 0.0
    %741 = vmatprep.subr.mxu0 0.0
    %742 = vmatpush1.xpose.msra.mxu0 0.0
    %743 = vmatprep.subr.mxu0 0.0
    %744 = vmatpush1.xpose.msra.mxu0 0.0
    %745 = vmatprep.subr.mxu0 0.0
    %746 = vmatpush1.xpose.msra.mxu0 0.0
    %747 = vmatprep.subr.mxu0 0.0
    %748 = vmatpush1.xpose.msra.mxu0 0.0
    %749 = vmatprep.subr.mxu0 0.0
    %750 = vmatpush1.xpose.msra.mxu0 0.0
    %751 = vmatprep.subr.mxu0 0.0
    %752 = vmatpush1.xpose.msra.mxu0 0.0
    %753 = vmatprep.subr.mxu0 0.0
    %754 = vmatpush1.xpose.msra.mxu0 0.0
    %755 = vmatprep.subr.mxu0 0.0
    %756 = vmatpush1.xpose.msra.mxu0 %v723
    %757 = vmatprep.subr.mxu0 0.0
    %758 = vmatpush2.xpose.msra.mxu0 0.0
    %759 = vmatprep.subr.mxu0 0.0
    %760 = vmatpush2.xpose.msra.mxu0 0.0
    %761 = vmatprep.subr.mxu0 0.0
    %762 = vmatpush2.xpose.msra.mxu0 0.0
    %763 = vmatprep.subr.mxu0 0.0
    %764 = vmatpush2.xpose.msra.mxu0 0.0
    %765 = vmatprep.subr.mxu0 0.0
    %766 = vmatpush2.xpose.msra.mxu0 0.0
    %767 = vmatprep.subr.mxu0 0.0
    %768 = vmatpush2.xpose.msra.mxu0 0.0
    %769 = vmatprep.subr.mxu0 0.0
    %770 = vmatpush2.xpose.msra.mxu0 0.0
    %771 = vmatprep.subr.mxu0 0.0
    %772 = vmatpush2.xpose.msra.mxu0 0.0
    %773 = vmatprep.subr.mxu0 0.0
    %774 = vmatpush2.xpose.msra.mxu0 0.0
    %775 = vmatprep.subr.mxu0 0.0
    %776 = vmatpush2.xpose.msra.mxu0 0.0
    %777 = vmatprep.subr.mxu0 0.0
    %778 = vmatpush2.xpose.msra.mxu0 0.0
    %779 = vmatprep.subr.mxu0 0.0
    %780 = vmatpush2.xpose.msra.mxu0 0.0
    %781 = vmatprep.subr.mxu0 0.0
    %782 = vmatpush2.xpose.msra.mxu0 0.0
    %783 = vmatprep.subr.mxu0 0.0
    %784 = vmatpush2.xpose.msra.mxu0 0.0
    %785 = vmatprep.subr.mxu0 0.0
    %786 = vmatpush2.xpose.msra.mxu0 0.0
    %787 = vmatprep.subr.mxu0 0.0
    %788 = vmatpush2.xpose.msra.mxu0 0.0
    %789 = vmatprep.mubr.f32.mxu0 0.0
    %790 = vmatmul.mubr.f32.gmra.mxu0 %v721
    %v791 = vpop.f32.mrf.mxu0
    %v792 = vadd.f32 0.0, %v791
    %v793 = vpop.f32.mrf.mxu0
    %794 = vdwg.mxu0
    %v795 = vsel %vm390, %v792, -inf
    %796 = vmax.xlane.f32.xlu0 %v795
    %v797 = vpop.xlane.xlu0 %796
    %v798 = vsub.f32 %v792, %v797
    %v799 = vmul.f32 %v798, 1.442695
    %v800 = vpow.pop %v799
    %v801 = vsel %vm390, %v800, 0.0
    %802 = vadd.xlane.f32.xlu0 %v801
    %v803 = vpop.xlane.xlu0 %802
    %v804 = vrcp.pop %v803
    %v805 = vmul.f32 %v800, %v804
    %806 = vrot.lane.b32.xlu0 %v381, 112
    %v807 = vpop.permute.xlu0 %806
    %v810 = vsel %vm390, %v805, 0
    %812 = vmatprep.subr.mxu0 0.0
    %813 = vmatpush1.msra.mxu0 0.0
    %814 = vmatprep.subr.mxu0 0.0
    %815 = vmatpush1.msra.mxu0 0.0
    %816 = vmatprep.subr.mxu0 0.0
    %817 = vmatpush1.msra.mxu0 0.0
    %818 = vmatprep.subr.mxu0 0.0
    %819 = vmatpush1.msra.mxu0 0.0
    %820 = vmatprep.subr.mxu0 0.0
    %821 = vmatpush1.msra.mxu0 0.0
    %822 = vmatprep.subr.mxu0 0.0
    %823 = vmatpush1.msra.mxu0 0.0
    %824 = vmatprep.subr.mxu0 0.0
    %825 = vmatpush1.msra.mxu0 0.0
    %826 = vmatprep.subr.mxu0 0.0
    %827 = vmatpush1.msra.mxu0 0.0
    %828 = vmatprep.subr.mxu0 0.0
    %829 = vmatpush1.msra.mxu0 0.0
    %830 = vmatprep.subr.mxu0 0.0
    %831 = vmatpush1.msra.mxu0 0.0
    %832 = vmatprep.subr.mxu0 0.0
    %833 = vmatpush1.msra.mxu0 0.0
    %834 = vmatprep.subr.mxu0 0.0
    %835 = vmatpush1.msra.mxu0 0.0
    %836 = vmatprep.subr.mxu0 0.0
    %837 = vmatpush1.msra.mxu0 0.0
    %838 = vmatprep.subr.mxu0 0.0
    %839 = vmatpush1.msra.mxu0 0.0
    %840 = vmatprep.subr.mxu0 0.0
    %841 = vmatpush1.msra.mxu0 0.0
    %842 = vmatprep.subr.mxu0 0.0
    %843 = vmatpush1.msra.mxu0 %v807
    %844 = vmatprep.subr.mxu0 0.0
    %845 = vmatpush2.msra.mxu0 0.0
    %846 = vmatprep.subr.mxu0 0.0
    %847 = vmatpush2.msra.mxu0 0.0
    %848 = vmatprep.subr.mxu0 0.0
    %849 = vmatpush2.msra.mxu0 0.0
    %850 = vmatprep.subr.mxu0 0.0
    %851 = vmatpush2.msra.mxu0 0.0
    %852 = vmatprep.subr.mxu0 0.0
    %853 = vmatpush2.msra.mxu0 0.0
    %854 = vmatprep.subr.mxu0 0.0
    %855 = vmatpush2.msra.mxu0 0.0
    %856 = vmatprep.subr.mxu0 0.0
    %857 = vmatpush2.msra.mxu0 0.0
    %858 = vmatprep.subr.mxu0 0.0
    %859 = vmatpush2.msra.mxu0 0.0
    %860 = vmatprep.subr.mxu0 0.0
    %861 = vmatpush2.msra.mxu0 0.0
    %862 = vmatprep.subr.mxu0 0.0
    %863 = vmatpush2.msra.mxu0 0.0
    %864 = vmatprep.subr.mxu0 0.0
    %865 = vmatpush2.msra.mxu0 0.0
    %866 = vmatprep.subr.mxu0 0.0
    %867 = vmatpush2.msra.mxu0 0.0
    %868 = vmatprep.subr.mxu0 0.0
    %869 = vmatpush2.msra.mxu0 0.0
    %870 = vmatprep.subr.mxu0 0.0
    %871 = vmatpush2.msra.mxu0 0.0
    %872 = vmatprep.subr.mxu0 0.0
    %873 = vmatpush2.msra.mxu0 0.0
    %874 = vmatprep.subr.mxu0 0.0
    %875 = vmatpush2.msra.mxu0 0.0
    %876 = vmatprep.mubr.f32.mxu0 0.0
    %877 = vmatmul.mubr.f32.gmra.mxu0 %v810
    %v878 = vpop.f32.mrf.mxu0
    %v879 = vadd.f32 0.0, %v878
    %v880 = vpop.f32.mrf.mxu0
    %881 = vdwg.mxu0
    %882 = vrot.lane.b32.xlu0 %v389, 104
    %v883 = vpop.permute.xlu0 %882
    %884 = vrot.lane.b32.xlu0 %v297, 104
    %v885 = vpop.permute.xlu0 %884
    %v886 = vsel %vm390, %v883, 0
    %v888 = vsel %vm390, %v885, 0
    %890 = vmatprep.subr.mxu0 0.0
    %891 = vmatpush1.xpose.msra.mxu0 0.0
    %892 = vmatprep.subr.mxu0 0.0
    %893 = vmatpush1.xpose.msra.mxu0 0.0
    %894 = vmatprep.subr.mxu0 0.0
    %895 = vmatpush1.xpose.msra.mxu0 0.0
    %896 = vmatprep.subr.mxu0 0.0
    %897 = vmatpush1.xpose.msra.mxu0 0.0
    %898 = vmatprep.subr.mxu0 0.0
    %899 = vmatpush1.xpose.msra.mxu0 0.0
    %900 = vmatprep.subr.mxu0 0.0
    %901 = vmatpush1.xpose.msra.mxu0 0.0
    %902 = vmatprep.subr.mxu0 0.0
    %903 = vmatpush1.xpose.msra.mxu0 0.0
    %904 = vmatprep.subr.mxu0 0.0
    %905 = vmatpush1.xpose.msra.mxu0 0.0
    %906 = vmatprep.subr.mxu0 0.0
    %907 = vmatpush1.xpose.msra.mxu0 0.0
    %908 = vmatprep.subr.mxu0 0.0
    %909 = vmatpush1.xpose.msra.mxu0 0.0
    %910 = vmatprep.subr.mxu0 0.0
    %911 = vmatpush1.xpose.msra.mxu0 0.0
    %912 = vmatprep.subr.mxu0 0.0
    %913 = vmatpush1.xpose.msra.mxu0 0.0
    %914 = vmatprep.subr.mxu0 0.0
    %915 = vmatpush1.xpose.msra.mxu0 0.0
    %916 = vmatprep.subr.mxu0 0.0
    %917 = vmatpush1.xpose.msra.mxu0 0.0
    %918 = vmatprep.subr.mxu0 0.0
    %919 = vmatpush1.xpose.msra.mxu0 0.0
    %920 = vmatprep.subr.mxu0 0.0
    %921 = vmatpush1.xpose.msra.mxu0 %v888
    %922 = vmatprep.subr.mxu0 0.0
    %923 = vmatpush2.xpose.msra.mxu0 0.0
    %924 = vmatprep.subr.mxu0 0.0
    %925 = vmatpush2.xpose.msra.mxu0 0.0
    %926 = vmatprep.subr.mxu0 0.0
    %927 = vmatpush2.xpose.msra.mxu0 0.0
    %928 = vmatprep.subr.mxu0 0.0
    %929 = vmatpush2.xpose.msra.mxu0 0.0
    %930 = vmatprep.subr.mxu0 0.0
    %931 = vmatpush2.xpose.msra.mxu0 0.0
    %932 = vmatprep.subr.mxu0 0.0
    %933 = vmatpush2.xpose.msra.mxu0 0.0
    %934 = vmatprep.subr.mxu0 0.0
    %935 = vmatpush2.xpose.msra.mxu0 0.0
    %936 = vmatprep.subr.mxu0 0.0
    %937 = vmatpush2.xpose.msra.mxu0 0.0
    %938 = vmatprep.subr.mxu0 0.0
    %939 = vmatpush2.xpose.msra.mxu0 0.0
    %940 = vmatprep.subr.mxu0 0.0
    %941 = vmatpush2.xpose.msra.mxu0 0.0
    %942 = vmatprep.subr.mxu0 0.0
    %943 = vmatpush2.xpose.msra.mxu0 0.0
    %944 = vmatprep.subr.mxu0 0.0
    %945 = vmatpush2.xpose.msra.mxu0 0.0
    %946 = vmatprep.subr.mxu0 0.0
    %947 = vmatpush2.xpose.msra.mxu0 0.0
    %948 = vmatprep.subr.mxu0 0.0
    %949 = vmatpush2.xpose.msra.mxu0 0.0
    %950 = vmatprep.subr.mxu0 0.0
    %951 = vmatpush2.xpose.msra.mxu0 0.0
    %952 = vmatprep.subr.mxu0 0.0
    %953 = vmatpush2.xpose.msra.mxu0 0.0
    %954 = vmatprep.mubr.f32.mxu0 0.0
    %955 = vmatmul.mubr.f32.gmra.mxu0 %v886
    %v956 = vpop.f32.mrf.mxu0
    %v957 = vadd.f32 0.0, %v956
    %v958 = vpop.f32.mrf.mxu0
    %959 = vdwg.mxu0
    %v960 = vsel %vm390, %v957, -inf
    %961 = vmax.xlane.f32.xlu0 %v960
    %v962 = vpop.xlane.xlu0 %961
    %v963 = vsub.f32 %v957, %v962
    %v964 = vmul.f32 %v963, 1.442695
    %v965 = vpow.pop %v964
    %v966 = vsel %vm390, %v965, 0.0
    %967 = vadd.xlane.f32.xlu0 %v966
    %v968 = vpop.xlane.xlu0 %967
    %v969 = vrcp.pop %v968
    %v970 = vmul.f32 %v965, %v969
    %971 = vrot.lane.b32.xlu0 %v381, 104
    %v972 = vpop.permute.xlu0 %971
    %v975 = vsel %vm390, %v970, 0
    %977 = vmatprep.subr.mxu0 0.0
    %978 = vmatpush1.msra.mxu0 0.0
    %979 = vmatprep.subr.mxu0 0.0
    %980 = vmatpush1.msra.mxu0 0.0
    %981 = vmatprep.subr.mxu0 0.0
    %982 = vmatpush1.msra.mxu0 0.0
    %983 = vmatprep.subr.mxu0 0.0
    %984 = vmatpush1.msra.mxu0 0.0
    %985 = vmatprep.subr.mxu0 0.0
    %986 = vmatpush1.msra.mxu0 0.0
    %987 = vmatprep.subr.mxu0 0.0
    %988 = vmatpush1.msra.mxu0 0.0
    %989 = vmatprep.subr.mxu0 0.0
    %990 = vmatpush1.msra.mxu0 0.0
    %991 = vmatprep.subr.mxu0 0.0
    %992 = vmatpush1.msra.mxu0 0.0
    %993 = vmatprep.subr.mxu0 0.0
    %994 = vmatpush1.msra.mxu0 0.0
    %995 = vmatprep.subr.mxu0 0.0
    %996 = vmatpush1.msra.mxu0 0.0
    %997 = vmatprep.subr.mxu0 0.0
    %998 = vmatpush1.msra.mxu0 0.0
    %999 = vmatprep.subr.mxu0 0.0
    %1000 = vmatpush1.msra.mxu0 0.0
    %1001 = vmatprep.subr.mxu0 0.0
    %1002 = vmatpush1.msra.mxu0 0.0
    %1003 = vmatprep.subr.mxu0 0.0
    %1004 = vmatpush1.msra.mxu0 0.0
    %1005 = vmatprep.subr.mxu0 0.0
    %1006 = vmatpush1.msra.mxu0 0.0
    %1007 = vmatprep.subr.mxu0 0.0
    %1008 = vmatpush1.msra.mxu0 %v972
    %1009 = vmatprep.subr.mxu0 0.0
    %1010 = vmatpush2.msra.mxu0 0.0
    %1011 = vmatprep.subr.mxu0 0.0
    %1012 = vmatpush2.msra.mxu0 0.0
    %1013 = vmatprep.subr.mxu0 0.0
    %1014 = vmatpush2.msra.mxu0 0.0
    %1015 = vmatprep.subr.mxu0 0.0
    %1016 = vmatpush2.msra.mxu0 0.0
    %1017 = vmatprep.subr.mxu0 0.0
    %1018 = vmatpush2.msra.mxu0 0.0
    %1019 = vmatprep.subr.mxu0 0.0
    %1020 = vmatpush2.msra.mxu0 0.0
    %1021 = vmatprep.subr.mxu0 0.0
    %1022 = vmatpush2.msra.mxu0 0.0
    %1023 = vmatprep.subr.mxu0 0.0
    %1024 = vmatpush2.msra.mxu0 0.0
    %1025 = vmatprep.subr.mxu0 0.0
    %1026 = vmatpush2.msra.mxu0 0.0
    %1027 = vmatprep.subr.mxu0 0.0
    %1028 = vmatpush2.msra.mxu0 0.0
    %1029 = vmatprep.subr.mxu0 0.0
    %1030 = vmatpush2.msra.mxu0 0.0
    %1031 = vmatprep.subr.mxu0 0.0
    %1032 = vmatpush2.msra.mxu0 0.0
    %1033 = vmatprep.subr.mxu0 0.0
    %1034 = vmatpush2.msra.mxu0 0.0
    %1035 = vmatprep.subr.mxu0 0.0
    %1036 = vmatpush2.msra.mxu0 0.0
    %1037 = vmatprep.subr.mxu0 0.0
    %1038 = vmatpush2.msra.mxu0 0.0
    %1039 = vmatprep.subr.mxu0 0.0
    %1040 = vmatpush2.msra.mxu0 0.0
    %1041 = vmatprep.mubr.f32.mxu0 0.0
    %1042 = vmatmul.mubr.f32.gmra.mxu0 %v975
    %v1043 = vpop.f32.mrf.mxu0
    %v1044 = vadd.f32 0.0, %v1043
    %v1045 = vpop.f32.mrf.mxu0
    %1046 = vdwg.mxu0
    %1048 = vrot.lane.b32.xlu0 %v714, 8
    %v1049 = vpop.permute.xlu0 %1048
    %1052 = vrot.lane.b32.xlu0 %v879, 16
    %v1053 = vpop.permute.xlu0 %1052
    %1056 = vrot.lane.b32.xlu0 %v1044, 24
    %v1057 = vpop.permute.xlu0 %1056
    %v1059 = vsel %vm390, %v548, %v1049
    %vm1060 = vcmask 130048
    %v1061 = vsel %vm1060, %v1059, %v1053
    %vm1062 = vcmask 195584
    %v1063 = vsel %vm1062, %v1061, %v1057
    %v1064 = vmul.f32 %v218, 0.35355338
    %v1066 = vsel %vm390, %v1064, 0
    %v1069 = vsel %vm390, %v302, 0
    %1071 = vmatprep.subr.mxu0 0.0
    %1072 = vmatpush1.xpose.msra.mxu0 0.0
    %1073 = vmatprep.subr.mxu0 0.0
    %1074 = vmatpush1.xpose.msra.mxu0 0.0
    %1075 = vmatprep.subr.mxu0 0.0
    %1076 = vmatpush1.xpose.msra.mxu0 0.0
    %1077 = vmatprep.subr.mxu0 0.0
    %1078 = vmatpush1.xpose.msra.mxu0 0.0
    %1079 = vmatprep.subr.mxu0 0.0
    %1080 = vmatpush1.xpose.msra.mxu0 0.0
    %1081 = vmatprep.subr.mxu0 0.0
    %1082 = vmatpush1.xpose.msra.mxu0 0.0
    %1083 = vmatprep.subr.mxu0 0.0
    %1084 = vmatpush1.xpose.msra.mxu0 0.0
    %1085 = vmatprep.subr.mxu0 0.0
    %1086 = vmatpush1.xpose.msra.mxu0 0.0
    %1087 = vmatprep.subr.mxu0 0.0
    %1088 = vmatpush1.xpose.msra.mxu0 0.0
    %1089 = vmatprep.subr.mxu0 0.0
    %1090 = vmatpush1.xpose.msra.mxu0 0.0
    %1091 = vmatprep.subr.mxu0 0.0
    %1092 = vmatpush1.xpose.msra.mxu0 0.0
    %1093 = vmatprep.subr.mxu0 0.0
    %1094 = vmatpush1.xpose.msra.mxu0 0.0
    %1095 = vmatprep.subr.mxu0 0.0
    %1096 = vmatpush1.xpose.msra.mxu0 0.0
    %1097 = vmatprep.subr.mxu0 0.0
    %1098 = vmatpush1.xpose.msra.mxu0 0.0
    %1099 = vmatprep.subr.mxu0 0.0
    %1100 = vmatpush1.xpose.msra.mxu0 0.0
    %1101 = vmatprep.subr.mxu0 0.0
    %1102 = vmatpush1.xpose.msra.mxu0 %v1069
    %1103 = vmatprep.subr.mxu0 0.0
    %1104 = vmatpush2.xpose.msra.mxu0 0.0
    %1105 = vmatprep.subr.mxu0 0.0
    %1106 = vmatpush2.xpose.msra.mxu0 0.0
    %1107 = vmatprep.subr.mxu0 0.0
    %1108 = vmatpush2.xpose.msra.mxu0 0.0
    %1109 = vmatprep.subr.mxu0 0.0
    %1110 = vmatpush2.xpose.msra.mxu0 0.0
    %1111 = vmatprep.subr.mxu0 0.0
    %1112 = vmatpush2.xpose.msra.mxu0 0.0
    %1113 = vmatprep.subr.mxu0 0.0
    %1114 = vmatpush2.xpose.msra.mxu0 0.0
    %1115 = vmatprep.subr.mxu0 0.0
    %1116 = vmatpush2.xpose.msra.mxu0 0.0
    %1117 = vmatprep.subr.mxu0 0.0
    %1118 = vmatpush2.xpose.msra.mxu0 0.0
    %1119 = vmatprep.subr.mxu0 0.0
    %1120 = vmatpush2.xpose.msra.mxu0 0.0
    %1121 = vmatprep.subr.mxu0 0.0
    %1122 = vmatpush2.xpose.msra.mxu0 0.0
    %1123 = vmatprep.subr.mxu0 0.0
    %1124 = vmatpush2.xpose.msra.mxu0 0.0
    %1125 = vmatprep.subr.mxu0 0.0
    %1126 = vmatpush2.xpose.msra.mxu0 0.0
    %1127 = vmatprep.subr.mxu0 0.0
    %1128 = vmatpush2.xpose.msra.mxu0 0.0
    %1129 = vmatprep.subr.mxu0 0.0
    %1130 = vmatpush2.xpose.msra.mxu0 0.0
    %1131 = vmatprep.subr.mxu0 0.0
    %1132 = vmatpush2.xpose.msra.mxu0 0.0
    %1133 = vmatprep.subr.mxu0 0.0
    %1134 = vmatpush2.xpose.msra.mxu0 0.0
    %1135 = vmatprep.mubr.f32.mxu0 0.0
    %1136 = vmatmul.mubr.f32.gmra.mxu0 %v1066
    %v1137 = vpop.f32.mrf.mxu0
    %v1138 = vadd.f32 0.0, %v1137
    %v1139 = vpop.f32.mrf.mxu0
    %1140 = vdwg.mxu0
    %v1141 = vsel %vm390, %v1138, -inf
    %1142 = vmax.xlane.f32.xlu0 %v1141
    %v1143 = vpop.xlane.xlu0 %1142
    %v1144 = vsub.f32 %v1138, %v1143
    %v1145 = vmul.f32 %v1144, 1.442695
    %v1146 = vpow.pop %v1145
    %v1147 = vsel %vm390, %v1146, 0.0
    %1148 = vadd.xlane.f32.xlu0 %v1147
    %v1149 = vpop.xlane.xlu0 %1148
    %v1150 = vrcp.pop %v1149
    %v1151 = vmul.f32 %v1146, %v1150
    %v1153 = vsel %vm390, %v1151, 0
    %1155 = vmatprep.subr.mxu0 0.0
    %1156 = vmatpush1.msra.mxu0 0.0
    %1157 = vmatprep.subr.mxu0 0.0
    %1158 = vmatpush1.msra.mxu0 0.0
    %1159 = vmatprep.subr.mxu0 0.0
    %1160 = vmatpush1.msra.mxu0 0.0
    %1161 = vmatprep.subr.mxu0 0.0
    %1162 = vmatpush1.msra.mxu0 0.0
    %1163 = vmatprep.subr.mxu0 0.0
    %1164 = vmatpush1.msra.mxu0 0.0
    %1165 = vmatprep.subr.mxu0 0.0
    %1166 = vmatpush1.msra.mxu0 0.0
    %1167 = vmatprep.subr.mxu0 0.0
    %1168 = vmatpush1.msra.mxu0 0.0
    %1169 = vmatprep.subr.mxu0 0.0
    %1170 = vmatpush1.msra.mxu0 0.0
    %1171 = vmatprep.subr.mxu0 0.0
    %1172 = vmatpush1.msra.mxu0 0.0
    %1173 = vmatprep.subr.mxu0 0.0
    %1174 = vmatpush1.msra.mxu0 0.0
    %1175 = vmatprep.subr.mxu0 0.0
    %1176 = vmatpush1.msra.mxu0 0.0
    %1177 = vmatprep.subr.mxu0 0.0
    %1178 = vmatpush1.msra.mxu0 0.0
    %1179 = vmatprep.subr.mxu0 0.0
    %1180 = vmatpush1.msra.mxu0 0.0
    %1181 = vmatprep.subr.mxu0 0.0
    %1182 = vmatpush1.msra.mxu0 0.0
    %1183 = vmatprep.subr.mxu0 0.0
    %1184 = vmatpush1.msra.mxu0 0.0
    %1185 = vmatprep.subr.mxu0 0.0
    %1186 = vmatpush1.msra.mxu0 %v386
    %1187 = vmatprep.subr.mxu0 0.0
    %1188 = vmatpush2.msra.mxu0 0.0
    %1189 = vmatprep.subr.mxu0 0.0
    %1190 = vmatpush2.msra.mxu0 0.0
    %1191 = vmatprep.subr.mxu0 0.0
    %1192 = vmatpush2.msra.mxu0 0.0
    %1193 = vmatprep.subr.mxu0 0.0
    %1194 = vmatpush2.msra.mxu0 0.0
    %1195 = vmatprep.subr.mxu0 0.0
    %1196 = vmatpush2.msra.mxu0 0.0
    %1197 = vmatprep.subr.mxu0 0.0
    %1198 = vmatpush2.msra.mxu0 0.0
    %1199 = vmatprep.subr.mxu0 0.0
    %1200 = vmatpush2.msra.mxu0 0.0
    %1201 = vmatprep.subr.mxu0 0.0
    %1202 = vmatpush2.msra.mxu0 0.0
    %1203 = vmatprep.subr.mxu0 0.0
    %1204 = vmatpush2.msra.mxu0 0.0
    %1205 = vmatprep.subr.mxu0 0.0
    %1206 = vmatpush2.msra.mxu0 0.0
    %1207 = vmatprep.subr.mxu0 0.0
    %1208 = vmatpush2.msra.mxu0 0.0
    %1209 = vmatprep.subr.mxu0 0.0
    %1210 = vmatpush2.msra.mxu0 0.0
    %1211 = vmatprep.subr.mxu0 0.0
    %1212 = vmatpush2.msra.mxu0 0.0
    %1213 = vmatprep.subr.mxu0 0.0
    %1214 = vmatpush2.msra.mxu0 0.0
    %1215 = vmatprep.subr.mxu0 0.0
    %1216 = vmatpush2.msra.mxu0 0.0
    %1217 = vmatprep.subr.mxu0 0.0
    %1218 = vmatpush2.msra.mxu0 0.0
    %1219 = vmatprep.mubr.f32.mxu0 0.0
    %1220 = vmatmul.mubr.f32.gmra.mxu0 %v1153
    %v1221 = vpop.f32.mrf.mxu0
    %v1222 = vadd.f32 0.0, %v1221
    %v1223 = vpop.f32.mrf.mxu0
    %1224 = vdwg.mxu0
    %1225 = vrot.lane.b32.xlu0 %v1064, 120
    %v1226 = vpop.permute.xlu0 %1225
    %1227 = vrot.lane.b32.xlu0 %v302, 120
    %v1228 = vpop.permute.xlu0 %1227
    %v1229 = vsel %vm390, %v1226, 0
    %v1231 = vsel %vm390, %v1228, 0
    %1233 = vmatprep.subr.mxu0 0.0
    %1234 = vmatpush1.xpose.msra.mxu0 0.0
    %1235 = vmatprep.subr.mxu0 0.0
    %1236 = vmatpush1.xpose.msra.mxu0 0.0
    %1237 = vmatprep.subr.mxu0 0.0
    %1238 = vmatpush1.xpose.msra.mxu0 0.0
    %1239 = vmatprep.subr.mxu0 0.0
    %1240 = vmatpush1.xpose.msra.mxu0 0.0
    %1241 = vmatprep.subr.mxu0 0.0
    %1242 = vmatpush1.xpose.msra.mxu0 0.0
    %1243 = vmatprep.subr.mxu0 0.0
    %1244 = vmatpush1.xpose.msra.mxu0 0.0
    %1245 = vmatprep.subr.mxu0 0.0
    %1246 = vmatpush1.xpose.msra.mxu0 0.0
    %1247 = vmatprep.subr.mxu0 0.0
    %1248 = vmatpush1.xpose.msra.mxu0 0.0
    %1249 = vmatprep.subr.mxu0 0.0
    %1250 = vmatpush1.xpose.msra.mxu0 0.0
    %1251 = vmatprep.subr.mxu0 0.0
    %1252 = vmatpush1.xpose.msra.mxu0 0.0
    %1253 = vmatprep.subr.mxu0 0.0
    %1254 = vmatpush1.xpose.msra.mxu0 0.0
    %1255 = vmatprep.subr.mxu0 0.0
    %1256 = vmatpush1.xpose.msra.mxu0 0.0
    %1257 = vmatprep.subr.mxu0 0.0
    %1258 = vmatpush1.xpose.msra.mxu0 0.0
    %1259 = vmatprep.subr.mxu0 0.0
    %1260 = vmatpush1.xpose.msra.mxu0 0.0
    %1261 = vmatprep.subr.mxu0 0.0
    %1262 = vmatpush1.xpose.msra.mxu0 0.0
    %1263 = vmatprep.subr.mxu0 0.0
    %1264 = vmatpush1.xpose.msra.mxu0 %v1231
    %1265 = vmatprep.subr.mxu0 0.0
    %1266 = vmatpush2.xpose.msra.mxu0 0.0
    %1267 = vmatprep.subr.mxu0 0.0
    %1268 = vmatpush2.xpose.msra.mxu0 0.0
    %1269 = vmatprep.subr.mxu0 0.0
    %1270 = vmatpush2.xpose.msra.mxu0 0.0
    %1271 = vmatprep.subr.mxu0 0.0
    %1272 = vmatpush2.xpose.msra.mxu0 0.0
    %1273 = vmatprep.subr.mxu0 0.0
    %1274 = vmatpush2.xpose.msra.mxu0 0.0
    %1275 = vmatprep.subr.mxu0 0.0
    %1276 = vmatpush2.xpose.msra.mxu0 0.0
    %1277 = vmatprep.subr.mxu0 0.0
    %1278 = vmatpush2.xpose.msra.mxu0 0.0
    %1279 = vmatprep.subr.mxu0 0.0
    %1280 = vmatpush2.xpose.msra.mxu0 0.0
    %1281 = vmatprep.subr.mxu0 0.0
    %1282 = vmatpush2.xpose.msra.mxu0 0.0
    %1283 = vmatprep.subr.mxu0 0.0
    %1284 = vmatpush2.xpose.msra.mxu0 0.0
    %1285 = vmatprep.subr.mxu0 0.0
    %1286 = vmatpush2.xpose.msra.mxu0 0.0
    %1287 = vmatprep.subr.mxu0 0.0
    %1288 = vmatpush2.xpose.msra.mxu0 0.0
    %1289 = vmatprep.subr.mxu0 0.0
    %1290 = vmatpush2.xpose.msra.mxu0 0.0
    %1291 = vmatprep.subr.mxu0 0.0
    %1292 = vmatpush2.xpose.msra.mxu0 0.0
    %1293 = vmatprep.subr.mxu0 0.0
    %1294 = vmatpush2.xpose.msra.mxu0 0.0
    %1295 = vmatprep.subr.mxu0 0.0
    %1296 = vmatpush2.xpose.msra.mxu0 0.0
    %1297 = vmatprep.mubr.f32.mxu0 0.0
    %1298 = vmatmul.mubr.f32.gmra.mxu0 %v1229
    %v1299 = vpop.f32.mrf.mxu0
    %v1300 = vadd.f32 0.0, %v1299
    %v1301 = vpop.f32.mrf.mxu0
    %1302 = vdwg.mxu0
    %v1303 = vsel %vm390, %v1300, -inf
    %1304 = vmax.xlane.f32.xlu0 %v1303
    %v1305 = vpop.xlane.xlu0 %1304
    %v1306 = vsub.f32 %v1300, %v1305
    %v1307 = vmul.f32 %v1306, 1.442695
    %v1308 = vpow.pop %v1307
    %v1309 = vsel %vm390, %v1308, 0.0
    %1310 = vadd.xlane.f32.xlu0 %v1309
    %v1311 = vpop.xlane.xlu0 %1310
    %v1312 = vrcp.pop %v1311
    %v1313 = vmul.f32 %v1308, %v1312
    %1315 = vrot.lane.b32.xlu0 %v386, 120
    %v1316 = vpop.permute.xlu0 %1315
    %v1319 = vsel %vm390, %v1313, 0
    %1321 = vmatprep.subr.mxu0 0.0
    %1322 = vmatpush1.msra.mxu0 0.0
    %1323 = vmatprep.subr.mxu0 0.0
    %1324 = vmatpush1.msra.mxu0 0.0
    %1325 = vmatprep.subr.mxu0 0.0
    %1326 = vmatpush1.msra.mxu0 0.0
    %1327 = vmatprep.subr.mxu0 0.0
    %1328 = vmatpush1.msra.mxu0 0.0
    %1329 = vmatprep.subr.mxu0 0.0
    %1330 = vmatpush1.msra.mxu0 0.0
    %1331 = vmatprep.subr.mxu0 0.0
    %1332 = vmatpush1.msra.mxu0 0.0
    %1333 = vmatprep.subr.mxu0 0.0
    %1334 = vmatpush1.msra.mxu0 0.0
    %1335 = vmatprep.subr.mxu0 0.0
    %1336 = vmatpush1.msra.mxu0 0.0
    %1337 = vmatprep.subr.mxu0 0.0
    %1338 = vmatpush1.msra.mxu0 0.0
    %1339 = vmatprep.subr.mxu0 0.0
    %1340 = vmatpush1.msra.mxu0 0.0
    %1341 = vmatprep.subr.mxu0 0.0
    %1342 = vmatpush1.msra.mxu0 0.0
    %1343 = vmatprep.subr.mxu0 0.0
    %1344 = vmatpush1.msra.mxu0 0.0
    %1345 = vmatprep.subr.mxu0 0.0
    %1346 = vmatpush1.msra.mxu0 0.0
    %1347 = vmatprep.subr.mxu0 0.0
    %1348 = vmatpush1.msra.mxu0 0.0
    %1349 = vmatprep.subr.mxu0 0.0
    %1350 = vmatpush1.msra.mxu0 0.0
    %1351 = vmatprep.subr.mxu0 0.0
    %1352 = vmatpush1.msra.mxu0 %v1316
    %1353 = vmatprep.subr.mxu0 0.0
    %1354 = vmatpush2.msra.mxu0 0.0
    %1355 = vmatprep.subr.mxu0 0.0
    %1356 = vmatpush2.msra.mxu0 0.0
    %1357 = vmatprep.subr.mxu0 0.0
    %1358 = vmatpush2.msra.mxu0 0.0
    %1359 = vmatprep.subr.mxu0 0.0
    %1360 = vmatpush2.msra.mxu0 0.0
    %1361 = vmatprep.subr.mxu0 0.0
    %1362 = vmatpush2.msra.mxu0 0.0
    %1363 = vmatprep.subr.mxu0 0.0
    %1364 = vmatpush2.msra.mxu0 0.0
    %1365 = vmatprep.subr.mxu0 0.0
    %1366 = vmatpush2.msra.mxu0 0.0
    %1367 = vmatprep.subr.mxu0 0.0
    %1368 = vmatpush2.msra.mxu0 0.0
    %1369 = vmatprep.subr.mxu0 0.0
    %1370 = vmatpush2.msra.mxu0 0.0
    %1371 = vmatprep.subr.mxu0 0.0
    %1372 = vmatpush2.msra.mxu0 0.0
    %1373 = vmatprep.subr.mxu0 0.0
    %1374 = vmatpush2.msra.mxu0 0.0
    %1375 = vmatprep.subr.mxu0 0.0
    %1376 = vmatpush2.msra.mxu0 0.0
    %1377 = vmatprep.subr.mxu0 0.0
    %1378 = vmatpush2.msra.mxu0 0.0
    %1379 = vmatprep.subr.mxu0 0.0
    %1380 = vmatpush2.msra.mxu0 0.0
    %1381 = vmatprep.subr.mxu0 0.0
    %1382 = vmatpush2.msra.mxu0 0.0
    %1383 = vmatprep.subr.mxu0 0.0
    %1384 = vmatpush2.msra.mxu0 0.0
    %1385 = vmatprep.mubr.f32.mxu0 0.0
    %1386 = vmatmul.mubr.f32.gmra.mxu0 %v1319
    %v1387 = vpop.f32.mrf.mxu0
    %v1388 = vadd.f32 0.0, %v1387
    %v1389 = vpop.f32.mrf.mxu0
    %1390 = vdwg.mxu0
    %1391 = vrot.lane.b32.xlu0 %v1064, 112
    %v1392 = vpop.permute.xlu0 %1391
    %1393 = vrot.lane.b32.xlu0 %v302, 112
    %v1394 = vpop.permute.xlu0 %1393
    %v1395 = vsel %vm390, %v1392, 0
    %v1397 = vsel %vm390, %v1394, 0
    %1399 = vmatprep.subr.mxu0 0.0
    %1400 = vmatpush1.xpose.msra.mxu0 0.0
    %1401 = vmatprep.subr.mxu0 0.0
    %1402 = vmatpush1.xpose.msra.mxu0 0.0
    %1403 = vmatprep.subr.mxu0 0.0
    %1404 = vmatpush1.xpose.msra.mxu0 0.0
    %1405 = vmatprep.subr.mxu0 0.0
    %1406 = vmatpush1.xpose.msra.mxu0 0.0
    %1407 = vmatprep.subr.mxu0 0.0
    %1408 = vmatpush1.xpose.msra.mxu0 0.0
    %1409 = vmatprep.subr.mxu0 0.0
    %1410 = vmatpush1.xpose.msra.mxu0 0.0
    %1411 = vmatprep.subr.mxu0 0.0
    %1412 = vmatpush1.xpose.msra.mxu0 0.0
    %1413 = vmatprep.subr.mxu0 0.0
    %1414 = vmatpush1.xpose.msra.mxu0 0.0
    %1415 = vmatprep.subr.mxu0 0.0
    %1416 = vmatpush1.xpose.msra.mxu0 0.0
    %1417 = vmatprep.subr.mxu0 0.0
    %1418 = vmatpush1.xpose.msra.mxu0 0.0
    %1419 = vmatprep.subr.mxu0 0.0
    %1420 = vmatpush1.xpose.msra.mxu0 0.0
    %1421 = vmatprep.subr.mxu0 0.0
    %1422 = vmatpush1.xpose.msra.mxu0 0.0
    %1423 = vmatprep.subr.mxu0 0.0
    %1424 = vmatpush1.xpose.msra.mxu0 0.0
    %1425 = vmatprep.subr.mxu0 0.0
    %1426 = vmatpush1.xpose.msra.mxu0 0.0
    %1427 = vmatprep.subr.mxu0 0.0
    %1428 = vmatpush1.xpose.msra.mxu0 0.0
    %1429 = vmatprep.subr.mxu0 0.0
    %1430 = vmatpush1.xpose.msra.mxu0 %v1397
    %1431 = vmatprep.subr.mxu0 0.0
    %1432 = vmatpush2.xpose.msra.mxu0 0.0
    %1433 = vmatprep.subr.mxu0 0.0
    %1434 = vmatpush2.xpose.msra.mxu0 0.0
    %1435 = vmatprep.subr.mxu0 0.0
    %1436 = vmatpush2.xpose.msra.mxu0 0.0
    %1437 = vmatprep.subr.mxu0 0.0
    %1438 = vmatpush2.xpose.msra.mxu0 0.0
    %1439 = vmatprep.subr.mxu0 0.0
    %1440 = vmatpush2.xpose.msra.mxu0 0.0
    %1441 = vmatprep.subr.mxu0 0.0
    %1442 = vmatpush2.xpose.msra.mxu0 0.0
    %1443 = vmatprep.subr.mxu0 0.0
    %1444 = vmatpush2.xpose.msra.mxu0 0.0
    %1445 = vmatprep.subr.mxu0 0.0
    %1446 = vmatpush2.xpose.msra.mxu0 0.0
    %1447 = vmatprep.subr.mxu0 0.0
    %1448 = vmatpush2.xpose.msra.mxu0 0.0
    %1449 = vmatprep.subr.mxu0 0.0
    %1450 = vmatpush2.xpose.msra.mxu0 0.0
    %1451 = vmatprep.subr.mxu0 0.0
    %1452 = vmatpush2.xpose.msra.mxu0 0.0
    %1453 = vmatprep.subr.mxu0 0.0
    %1454 = vmatpush2.xpose.msra.mxu0 0.0
    %1455 = vmatprep.subr.mxu0 0.0
    %1456 = vmatpush2.xpose.msra.mxu0 0.0
    %1457 = vmatprep.subr.mxu0 0.0
    %1458 = vmatpush2.xpose.msra.mxu0 0.0
    %1459 = vmatprep.subr.mxu0 0.0
    %1460 = vmatpush2.xpose.msra.mxu0 0.0
    %1461 = vmatprep.subr.mxu0 0.0
    %1462 = vmatpush2.xpose.msra.mxu0 0.0
    %1463 = vmatprep.mubr.f32.mxu0 0.0
    %1464 = vmatmul.mubr.f32.gmra.mxu0 %v1395
    %v1465 = vpop.f32.mrf.mxu0
    %v1466 = vadd.f32 0.0, %v1465
    %v1467 = vpop.f32.mrf.mxu0
    %1468 = vdwg.mxu0
    %v1469 = vsel %vm390, %v1466, -inf
    %1470 = vmax.xlane.f32.xlu0 %v1469
    %v1471 = vpop.xlane.xlu0 %1470
    %v1472 = vsub.f32 %v1466, %v1471
    %v1473 = vmul.f32 %v1472, 1.442695
    %v1474 = vpow.pop %v1473
    %v1475 = vsel %vm390, %v1474, 0.0
    %1476 = vadd.xlane.f32.xlu0 %v1475
    %v1477 = vpop.xlane.xlu0 %1476
    %v1478 = vrcp.pop %v1477
    %v1479 = vmul.f32 %v1474, %v1478
    %1480 = vrot.lane.b32.xlu0 %v386, 112
    %v1481 = vpop.permute.xlu0 %1480
    %v1484 = vsel %vm390, %v1479, 0
    %1486 = vmatprep.subr.mxu0 0.0
    %1487 = vmatpush1.msra.mxu0 0.0
    %1488 = vmatprep.subr.mxu0 0.0
    %1489 = vmatpush1.msra.mxu0 0.0
    %1490 = vmatprep.subr.mxu0 0.0
    %1491 = vmatpush1.msra.mxu0 0.0
    %1492 = vmatprep.subr.mxu0 0.0
    %1493 = vmatpush1.msra.mxu0 0.0
    %1494 = vmatprep.subr.mxu0 0.0
    %1495 = vmatpush1.msra.mxu0 0.0
    %1496 = vmatprep.subr.mxu0 0.0
    %1497 = vmatpush1.msra.mxu0 0.0
    %1498 = vmatprep.subr.mxu0 0.0
    %1499 = vmatpush1.msra.mxu0 0.0
    %1500 = vmatprep.subr.mxu0 0.0
    %1501 = vmatpush1.msra.mxu0 0.0
    %1502 = vmatprep.subr.mxu0 0.0
    %1503 = vmatpush1.msra.mxu0 0.0
    %1504 = vmatprep.subr.mxu0 0.0
    %1505 = vmatpush1.msra.mxu0 0.0
    %1506 = vmatprep.subr.mxu0 0.0
    %1507 = vmatpush1.msra.mxu0 0.0
    %1508 = vmatprep.subr.mxu0 0.0
    %1509 = vmatpush1.msra.mxu0 0.0
    %1510 = vmatprep.subr.mxu0 0.0
    %1511 = vmatpush1.msra.mxu0 0.0
    %1512 = vmatprep.subr.mxu0 0.0
    %1513 = vmatpush1.msra.mxu0 0.0
    %1514 = vmatprep.subr.mxu0 0.0
    %1515 = vmatpush1.msra.mxu0 0.0
    %1516 = vmatprep.subr.mxu0 0.0
    %1517 = vmatpush1.msra.mxu0 %v1481
    %1518 = vmatprep.subr.mxu0 0.0
    %1519 = vmatpush2.msra.mxu0 0.0
    %1520 = vmatprep.subr.mxu0 0.0
    %1521 = vmatpush2.msra.mxu0 0.0
    %1522 = vmatprep.subr.mxu0 0.0
    %1523 = vmatpush2.msra.mxu0 0.0
    %1524 = vmatprep.subr.mxu0 0.0
    %1525 = vmatpush2.msra.mxu0 0.0
    %1526 = vmatprep.subr.mxu0 0.0
    %1527 = vmatpush2.msra.mxu0 0.0
    %1528 = vmatprep.subr.mxu0 0.0
    %1529 = vmatpush2.msra.mxu0 0.0
    %1530 = vmatprep.subr.mxu0 0.0
    %1531 = vmatpush2.msra.mxu0 0.0
    %1532 = vmatprep.subr.mxu0 0.0
    %1533 = vmatpush2.msra.mxu0 0.0
    %1534 = vmatprep.subr.mxu0 0.0
    %1535 = vmatpush2.msra.mxu0 0.0
    %1536 = vmatprep.subr.mxu0 0.0
    %1537 = vmatpush2.msra.mxu0 0.0
    %1538 = vmatprep.subr.mxu0 0.0
    %1539 = vmatpush2.msra.mxu0 0.0
    %1540 = vmatprep.subr.mxu0 0.0
    %1541 = vmatpush2.msra.mxu0 0.0
    %1542 = vmatprep.subr.mxu0 0.0
    %1543 = vmatpush2.msra.mxu0 0.0
    %1544 = vmatprep.subr.mxu0 0.0
    %1545 = vmatpush2.msra.mxu0 0.0
    %1546 = vmatprep.subr.mxu0 0.0
    %1547 = vmatpush2.msra.mxu0 0.0
    %1548 = vmatprep.subr.mxu0 0.0
    %1549 = vmatpush2.msra.mxu0 0.0
    %1550 = vmatprep.mubr.f32.mxu0 0.0
    %1551 = vmatmul.mubr.f32.gmra.mxu0 %v1484
    %v1552 = vpop.f32.mrf.mxu0
    %v1553 = vadd.f32 0.0, %v1552
    %v1554 = vpop.f32.mrf.mxu0
    %1555 = vdwg.mxu0
    %1556 = vrot.lane.b32.xlu0 %v1064, 104
    %v1557 = vpop.permute.xlu0 %1556
    %1558 = vrot.lane.b32.xlu0 %v302, 104
    %v1559 = vpop.permute.xlu0 %1558
    %v1560 = vsel %vm390, %v1557, 0
    %v1562 = vsel %vm390, %v1559, 0
    %1564 = vmatprep.subr.mxu0 0.0
    %1565 = vmatpush1.xpose.msra.mxu0 0.0
    %1566 = vmatprep.subr.mxu0 0.0
    %1567 = vmatpush1.xpose.msra.mxu0 0.0
    %1568 = vmatprep.subr.mxu0 0.0
    %1569 = vmatpush1.xpose.msra.mxu0 0.0
    %1570 = vmatprep.subr.mxu0 0.0
    %1571 = vmatpush1.xpose.msra.mxu0 0.0
    %1572 = vmatprep.subr.mxu0 0.0
    %1573 = vmatpush1.xpose.msra.mxu0 0.0
    %1574 = vmatprep.subr.mxu0 0.0
    %1575 = vmatpush1.xpose.msra.mxu0 0.0
    %1576 = vmatprep.subr.mxu0 0.0
    %1577 = vmatpush1.xpose.msra.mxu0 0.0
    %1578 = vmatprep.subr.mxu0 0.0
    %1579 = vmatpush1.xpose.msra.mxu0 0.0
    %1580 = vmatprep.subr.mxu0 0.0
    %1581 = vmatpush1.xpose.msra.mxu0 0.0
    %1582 = vmatprep.subr.mxu0 0.0
    %1583 = vmatpush1.xpose.msra.mxu0 0.0
    %1584 = vmatprep.subr.mxu0 0.0
    %1585 = vmatpush1.xpose.msra.mxu0 0.0
    %1586 = vmatprep.subr.mxu0 0.0
    %1587 = vmatpush1.xpose.msra.mxu0 0.0
    %1588 = vmatprep.subr.mxu0 0.0
    %1589 = vmatpush1.xpose.msra.mxu0 0.0
    %1590 = vmatprep.subr.mxu0 0.0
    %1591 = vmatpush1.xpose.msra.mxu0 0.0
    %1592 = vmatprep.subr.mxu0 0.0
    %1593 = vmatpush1.xpose.msra.mxu0 0.0
    %1594 = vmatprep.subr.mxu0 0.0
    %1595 = vmatpush1.xpose.msra.mxu0 %v1562
    %1596 = vmatprep.subr.mxu0 0.0
    %1597 = vmatpush2.xpose.msra.mxu0 0.0
    %1598 = vmatprep.subr.mxu0 0.0
    %1599 = vmatpush2.xpose.msra.mxu0 0.0
    %1600 = vmatprep.subr.mxu0 0.0
    %1601 = vmatpush2.xpose.msra.mxu0 0.0
    %1602 = vmatprep.subr.mxu0 0.0
    %1603 = vmatpush2.xpose.msra.mxu0 0.0
    %1604 = vmatprep.subr.mxu0 0.0
    %1605 = vmatpush2.xpose.msra.mxu0 0.0
    %1606 = vmatprep.subr.mxu0 0.0
    %1607 = vmatpush2.xpose.msra.mxu0 0.0
    %1608 = vmatprep.subr.mxu0 0.0
    %1609 = vmatpush2.xpose.msra.mxu0 0.0
    %1610 = vmatprep.subr.mxu0 0.0
    %1611 = vmatpush2.xpose.msra.mxu0 0.0
    %1612 = vmatprep.subr.mxu0 0.0
    %1613 = vmatpush2.xpose.msra.mxu0 0.0
    %1614 = vmatprep.subr.mxu0 0.0
    %1615 = vmatpush2.xpose.msra.mxu0 0.0
    %1616 = vmatprep.subr.mxu0 0.0
    %1617 = vmatpush2.xpose.msra.mxu0 0.0
    %1618 = vmatprep.subr.mxu0 0.0
    %1619 = vmatpush2.xpose.msra.mxu0 0.0
    %1620 = vmatprep.subr.mxu0 0.0
    %1621 = vmatpush2.xpose.msra.mxu0 0.0
    %1622 = vmatprep.subr.mxu0 0.0
    %1623 = vmatpush2.xpose.msra.mxu0 0.0
    %1624 = vmatprep.subr.mxu0 0.0
    %1625 = vmatpush2.xpose.msra.mxu0 0.0
    %1626 = vmatprep.subr.mxu0 0.0
    %1627 = vmatpush2.xpose.msra.mxu0 0.0
    %1628 = vmatprep.mubr.f32.mxu0 0.0
    %1629 = vmatmul.mubr.f32.gmra.mxu0 %v1560
    %v1630 = vpop.f32.mrf.mxu0
    %v1631 = vadd.f32 0.0, %v1630
    %v1632 = vpop.f32.mrf.mxu0
    %1633 = vdwg.mxu0
    %v1634 = vsel %vm390, %v1631, -inf
    %1635 = vmax.xlane.f32.xlu0 %v1634
    %v1636 = vpop.xlane.xlu0 %1635
    %v1637 = vsub.f32 %v1631, %v1636
    %v1638 = vmul.f32 %v1637, 1.442695
    %v1639 = vpow.pop %v1638
    %v1640 = vsel %vm390, %v1639, 0.0
    %1641 = vadd.xlane.f32.xlu0 %v1640
    %v1642 = vpop.xlane.xlu0 %1641
    %v1643 = vrcp.pop %v1642
    %v1644 = vmul.f32 %v1639, %v1643
    %1645 = vrot.lane.b32.xlu0 %v386, 104
    %v1646 = vpop.permute.xlu0 %1645
    %v1649 = vsel %vm390, %v1644, 0
    %1651 = vmatprep.subr.mxu0 0.0
    %1652 = vmatpush1.msra.mxu0 0.0
    %1653 = vmatprep.subr.mxu0 0.0
    %1654 = vmatpush1.msra.mxu0 0.0
    %1655 = vmatprep.subr.mxu0 0.0
    %1656 = vmatpush1.msra.mxu0 0.0
    %1657 = vmatprep.subr.mxu0 0.0
    %1658 = vmatpush1.msra.mxu0 0.0
    %1659 = vmatprep.subr.mxu0 0.0
    %1660 = vmatpush1.msra.mxu0 0.0
    %1661 = vmatprep.subr.mxu0 0.0
    %1662 = vmatpush1.msra.mxu0 0.0
    %1663 = vmatprep.subr.mxu0 0.0
    %1664 = vmatpush1.msra.mxu0 0.0
    %1665 = vmatprep.subr.mxu0 0.0
    %1666 = vmatpush1.msra.mxu0 0.0
    %1667 = vmatprep.subr.mxu0 0.0
    %1668 = vmatpush1.msra.mxu0 0.0
    %1669 = vmatprep.subr.mxu0 0.0
    %1670 = vmatpush1.msra.mxu0 0.0
    %1671 = vmatprep.subr.mxu0 0.0
    %1672 = vmatpush1.msra.mxu0 0.0
    %1673 = vmatprep.subr.mxu0 0.0
    %1674 = vmatpush1.msra.mxu0 0.0
    %1675 = vmatprep.subr.mxu0 0.0
    %1676 = vmatpush1.msra.mxu0 0.0
    %1677 = vmatprep.subr.mxu0 0.0
    %1678 = vmatpush1.msra.mxu0 0.0
    %1679 = vmatprep.subr.mxu0 0.0
    %1680 = vmatpush1.msra.mxu0 0.0
    %1681 = vmatprep.subr.mxu0 0.0
    %1682 = vmatpush1.msra.mxu0 %v1646
    %1683 = vmatprep.subr.mxu0 0.0
    %1684 = vmatpush2.msra.mxu0 0.0
    %1685 = vmatprep.subr.mxu0 0.0
    %1686 = vmatpush2.msra.mxu0 0.0
    %1687 = vmatprep.subr.mxu0 0.0
    %1688 = vmatpush2.msra.mxu0 0.0
    %1689 = vmatprep.subr.mxu0 0.0
    %1690 = vmatpush2.msra.mxu0 0.0
    %1691 = vmatprep.subr.mxu0 0.0
    %1692 = vmatpush2.msra.mxu0 0.0
    %1693 = vmatprep.subr.mxu0 0.0
    %1694 = vmatpush2.msra.mxu0 0.0
    %1695 = vmatprep.subr.mxu0 0.0
    %1696 = vmatpush2.msra.mxu0 0.0
    %1697 = vmatprep.subr.mxu0 0.0
    %1698 = vmatpush2.msra.mxu0 0.0
    %1699 = vmatprep.subr.mxu0 0.0
    %1700 = vmatpush2.msra.mxu0 0.0
    %1701 = vmatprep.subr.mxu0 0.0
    %1702 = vmatpush2.msra.mxu0 0.0
    %1703 = vmatprep.subr.mxu0 0.0
    %1704 = vmatpush2.msra.mxu0 0.0
    %1705 = vmatprep.subr.mxu0 0.0
    %1706 = vmatpush2.msra.mxu0 0.0
    %1707 = vmatprep.subr.mxu0 0.0
    %1708 = vmatpush2.msra.mxu0 0.0
    %1709 = vmatprep.subr.mxu0 0.0
    %1710 = vmatpush2.msra.mxu0 0.0
    %1711 = vmatprep.subr.mxu0 0.0
    %1712 = vmatpush2.msra.mxu0 0.0
    %1713 = vmatprep.subr.mxu0 0.0
    %1714 = vmatpush2.msra.mxu0 0.0
    %1715 = vmatprep.mubr.f32.mxu0 0.0
    %1716 = vmatmul.mubr.f32.gmra.mxu0 %v1649
    %v1717 = vpop.f32.mrf.mxu0
    %v1718 = vadd.f32 0.0, %v1717
    %v1719 = vpop.f32.mrf.mxu0
    %1720 = vdwg.mxu0
    %1722 = vrot.lane.b32.xlu0 %v1388, 8
    %v1723 = vpop.permute.xlu0 %1722
    %1726 = vrot.lane.b32.xlu0 %v1553, 16
    %v1727 = vpop.permute.xlu0 %1726
    %1730 = vrot.lane.b32.xlu0 %v1718, 24
    %v1731 = vpop.permute.xlu0 %1730
    %v1733 = vsel %vm390, %v1222, %v1723
    %v1734 = vsel %vm1060, %v1733, %v1727
    %v1735 = vsel %vm1062, %v1734, %v1731
    %v1736 = vld [vmem:[#allocation10] sm:$0xff]
    %v1737 = vld [vmem:[#allocation10 + $0x8] sm:$0xff]
    %v1738 = vld [vmem:[#allocation10 + $0x10] sm:$0xff]
    %v1739 = vld [vmem:[#allocation10 + $0x18] sm:$0xff]
    %v1740 = vld [vmem:[%s6] sm:$0x1]
    %v1742 = vlaneseq
    %v1743 = vshrl.u32 %v1742, 7
    %v1744 = vsub.s32 0, %v1743
    %v1745 = vrot.slane %v1740, %v1744
    %v1748 = vsel %vm139, %v1063, 0
    %v1751 = vsel %vm139, %v1735, 0
    %1753 = vmatprep.subr.mxu0 0.0
    %1754 = vmatpush1.msra.mxu0 0.0
    %1755 = vmatprep.subr.mxu0 0.0
    %1756 = vmatpush1.msra.mxu0 0.0
    %1757 = vmatprep.subr.mxu0 0.0
    %1758 = vmatpush1.msra.mxu0 0.0
    %1759 = vmatprep.subr.mxu0 0.0
    %1760 = vmatpush1.msra.mxu0 0.0
    %1761 = vmatprep.subr.mxu0 0.0
    %1762 = vmatpush1.msra.mxu0 0.0
    %1763 = vmatprep.subr.mxu0 0.0
    %1764 = vmatpush1.msra.mxu0 0.0
    %1765 = vmatprep.subr.mxu0 0.0
    %1766 = vmatpush1.msra.mxu0 0.0
    %1767 = vmatprep.subr.mxu0 0.0
    %1768 = vmatpush1.msra.mxu0 0.0
    %1769 = vmatprep.subr.mxu0 0.0
    %1770 = vmatpush1.msra.mxu0 0.0
    %1771 = vmatprep.subr.mxu0 0.0
    %1772 = vmatpush1.msra.mxu0 0.0
    %1773 = vmatprep.subr.mxu0 0.0
    %1774 = vmatpush1.msra.mxu0 0.0
    %1775 = vmatprep.subr.mxu0 0.0
    %1776 = vmatpush1.msra.mxu0 0.0
    %1777 = vmatprep.subr.mxu0 0.0
    %1778 = vmatpush1.msra.mxu0 %v1739
    %1779 = vmatprep.subr.mxu0 0.0
    %1780 = vmatpush1.msra.mxu0 %v1738
    %1781 = vmatprep.subr.mxu0 0.0
    %1782 = vmatpush1.msra.mxu0 %v1737
    %1783 = vmatprep.subr.mxu0 0.0
    %1784 = vmatpush1.msra.mxu0 %v1736
    %1785 = vmatprep.subr.mxu0 0.0
    %1786 = vmatpush2.msra.mxu0 0.0
    %1787 = vmatprep.subr.mxu0 0.0
    %1788 = vmatpush2.msra.mxu0 0.0
    %1789 = vmatprep.subr.mxu0 0.0
    %1790 = vmatpush2.msra.mxu0 0.0
    %1791 = vmatprep.subr.mxu0 0.0
    %1792 = vmatpush2.msra.mxu0 0.0
    %1793 = vmatprep.subr.mxu0 0.0
    %1794 = vmatpush2.msra.mxu0 0.0
    %1795 = vmatprep.subr.mxu0 0.0
    %1796 = vmatpush2.msra.mxu0 0.0
    %1797 = vmatprep.subr.mxu0 0.0
    %1798 = vmatpush2.msra.mxu0 0.0
    %1799 = vmatprep.subr.mxu0 0.0
    %1800 = vmatpush2.msra.mxu0 0.0
    %1801 = vmatprep.subr.mxu0 0.0
    %1802 = vmatpush2.msra.mxu0 0.0
    %1803 = vmatprep.subr.mxu0 0.0
    %1804 = vmatpush2.msra.mxu0 0.0
    %1805 = vmatprep.subr.mxu0 0.0
    %1806 = vmatpush2.msra.mxu0 0.0
    %1807 = vmatprep.subr.mxu0 0.0
    %1808 = vmatpush2.msra.mxu0 0.0
    %1809 = vmatprep.subr.mxu0 0.0
    %1810 = vmatpush2.msra.mxu0 0.0
    %1811 = vmatprep.subr.mxu0 0.0
    %1812 = vmatpush2.msra.mxu0 0.0
    %1813 = vmatprep.subr.mxu0 0.0
    %1814 = vmatpush2.msra.mxu0 0.0
    %1815 = vmatprep.subr.mxu0 0.0
    %1816 = vmatpush2.msra.mxu0 0.0
    %1817 = vmatprep.mubr.f32.mxu0 0.0
    %1818 = vmatmul.mubr.f32.gmra.mxu0 %v1748
    %v1819 = vpop.f32.mrf.mxu0
    %v1820 = vadd.f32 %v1745, %v1819
    %v1821 = vpop.f32.mrf.mxu0
    %1822 = vmatprep.mubr.f32.mxu0 0.0
    %1823 = vmatmul.mubr.f32.gmra.mxu0 %v1751
    %v1824 = vpop.f32.mrf.mxu0
    %v1825 = vadd.f32 %v1745, %v1824
    %v1826 = vpop.f32.mrf.mxu0
    %1827 = vdwg.mxu0
    %v1828 = vadd.f32 %v1820, %v128
    %v1829 = vadd.f32 %v1825, %v129
    %v1830 = vld [vmem:[#allocation11] sm:$0xff]
    %v1831 = vld [vmem:[#allocation11 + $0x8] sm:$0xff]
    %v1832 = vld [vmem:[#allocation11 + $0x10] sm:$0xff]
    %v1833 = vld [vmem:[#allocation11 + $0x18] sm:$0xff]
    %v1835 = vsel %vm139, %v1828, 0
    %v1838 = vsel %vm139, %v1829, 0
    %1840 = vmatprep.subr.mxu0 0.0
    %1841 = vmatpush1.msra.mxu0 0.0
    %1842 = vmatprep.subr.mxu0 0.0
    %1843 = vmatpush1.msra.mxu0 0.0
    %1844 = vmatprep.subr.mxu0 0.0
    %1845 = vmatpush1.msra.mxu0 0.0
    %1846 = vmatprep.subr.mxu0 0.0
    %1847 = vmatpush1.msra.mxu0 0.0
    %1848 = vmatprep.subr.mxu0 0.0
    %1849 = vmatpush1.msra.mxu0 0.0
    %1850 = vmatprep.subr.mxu0 0.0
    %1851 = vmatpush1.msra.mxu0 0.0
    %1852 = vmatprep.subr.mxu0 0.0
    %1853 = vmatpush1.msra.mxu0 0.0
    %1854 = vmatprep.subr.mxu0 0.0
    %1855 = vmatpush1.msra.mxu0 0.0
    %1856 = vmatprep.subr.mxu0 0.0
    %1857 = vmatpush1.msra.mxu0 0.0
    %1858 = vmatprep.subr.mxu0 0.0
    %1859 = vmatpush1.msra.mxu0 0.0
    %1860 = vmatprep.subr.mxu0 0.0
    %1861 = vmatpush1.msra.mxu0 0.0
    %1862 = vmatprep.subr.mxu0 0.0
    %1863 = vmatpush1.msra.mxu0 0.0
    %1864 = vmatprep.subr.mxu0 0.0
    %1865 = vmatpush1.msra.mxu0 %v1833
    %1866 = vmatprep.subr.mxu0 0.0
    %1867 = vmatpush1.msra.mxu0 %v1832
    %1868 = vmatprep.subr.mxu0 0.0
    %1869 = vmatpush1.msra.mxu0 %v1831
    %1870 = vmatprep.subr.mxu0 0.0
    %1871 = vmatpush1.msra.mxu0 %v1830
    %1872 = vmatprep.subr.mxu0 0.0
    %1873 = vmatpush2.msra.mxu0 0.0
    %1874 = vmatprep.subr.mxu0 0.0
    %1875 = vmatpush2.msra.mxu0 0.0
    %1876 = vmatprep.subr.mxu0 0.0
    %1877 = vmatpush2.msra.mxu0 0.0
    %1878 = vmatprep.subr.mxu0 0.0
    %1879 = vmatpush2.msra.mxu0 0.0
    %1880 = vmatprep.subr.mxu0 0.0
    %1881 = vmatpush2.msra.mxu0 0.0
    %1882 = vmatprep.subr.mxu0 0.0
    %1883 = vmatpush2.msra.mxu0 0.0
    %1884 = vmatprep.subr.mxu0 0.0
    %1885 = vmatpush2.msra.mxu0 0.0
    %1886 = vmatprep.subr.mxu0 0.0
    %1887 = vmatpush2.msra.mxu0 0.0
    %1888 = vmatprep.subr.mxu0 0.0
    %1889 = vmatpush2.msra.mxu0 0.0
    %1890 = vmatprep.subr.mxu0 0.0
    %1891 = vmatpush2.msra.mxu0 0.0
    %1892 = vmatprep.subr.mxu0 0.0
    %1893 = vmatpush2.msra.mxu0 0.0
    %1894 = vmatprep.subr.mxu0 0.0
    %1895 = vmatpush2.msra.mxu0 0.0
    %1896 = vmatprep.subr.mxu0 0.0
    %1897 = vmatpush2.msra.mxu0 0.0
    %1898 = vmatprep.subr.mxu0 0.0
    %1899 = vmatpush2.msra.mxu0 0.0
    %1900 = vmatprep.subr.mxu0 0.0
    %1901 = vmatpush2.msra.mxu0 0.0
    %1902 = vmatprep.subr.mxu0 0.0
    %1903 = vmatpush2.msra.mxu0 0.0
    %1904 = vmatprep.mubr.f32.mxu0 0.0
    %1905 = vmatmul.mubr.f32.gmra.mxu0 %v1835
    %v1906 = vpop.f32.mrf.mxu0
    %v1907 = vadd.f32 0.0, %v1906
    %v1908 = vpop.f32.mrf.mxu0
    %1909 = vmatprep.mubr.f32.mxu0 0.0
    %1910 = vmatmul.mubr.f32.gmra.mxu0 %v1838
    %v1911 = vpop.f32.mrf.mxu0
    %v1912 = vadd.f32 0.0, %v1911
    %v1913 = vpop.f32.mrf.mxu0
    %1914 = vdwg.mxu0
    %v1915 = vld [vmem:[#allocation13] sm:$0xff]
    %v1916 = vld [vmem:[#allocation13 + $0x8] sm:$0xff]
    %v1917 = vld [vmem:[#allocation13 + $0x10] sm:$0xff]
    %v1918 = vld [vmem:[#allocation13 + $0x18] sm:$0xff]
    %v1920 = vsel %vm139, %v1907, 0
    %v1923 = vsel %vm139, %v1912, 0
    %1925 = vmatprep.subr.mxu0 0.0
    %1926 = vmatpush1.msra.mxu0 0.0
    %1927 = vmatprep.subr.mxu0 0.0
    %1928 = vmatpush1.msra.mxu0 0.0
    %1929 = vmatprep.subr.mxu0 0.0
    %1930 = vmatpush1.msra.mxu0 0.0
    %1931 = vmatprep.subr.mxu0 0.0
    %1932 = vmatpush1.msra.mxu0 0.0
    %1933 = vmatprep.subr.mxu0 0.0
    %1934 = vmatpush1.msra.mxu0 0.0
    %1935 = vmatprep.subr.mxu0 0.0
    %1936 = vmatpush1.msra.mxu0 0.0
    %1937 = vmatprep.subr.mxu0 0.0
    %1938 = vmatpush1.msra.mxu0 0.0
    %1939 = vmatprep.subr.mxu0 0.0
    %1940 = vmatpush1.msra.mxu0 0.0
    %1941 = vmatprep.subr.mxu0 0.0
    %1942 = vmatpush1.msra.mxu0 0.0
    %1943 = vmatprep.subr.mxu0 0.0
    %1944 = vmatpush1.msra.mxu0 0.0
    %1945 = vmatprep.subr.mxu0 0.0
    %1946 = vmatpush1.msra.mxu0 0.0
    %1947 = vmatprep.subr.mxu0 0.0
    %1948 = vmatpush1.msra.mxu0 0.0
    %1949 = vmatprep.subr.mxu0 0.0
    %1950 = vmatpush1.msra.mxu0 %v1918
    %1951 = vmatprep.subr.mxu0 0.0
    %1952 = vmatpush1.msra.mxu0 %v1917
    %1953 = vmatprep.subr.mxu0 0.0
    %1954 = vmatpush1.msra.mxu0 %v1916
    %1955 = vmatprep.subr.mxu0 0.0
    %1956 = vmatpush1.msra.mxu0 %v1915
    %1957 = vmatprep.subr.mxu0 0.0
    %1958 = vmatpush2.msra.mxu0 0.0
    %1959 = vmatprep.subr.mxu0 0.0
    %1960 = vmatpush2.msra.mxu0 0.0
    %1961 = vmatprep.subr.mxu0 0.0
    %1962 = vmatpush2.msra.mxu0 0.0
    %1963 = vmatprep.subr.mxu0 0.0
    %1964 = vmatpush2.msra.mxu0 0.0
    %1965 = vmatprep.subr.mxu0 0.0
    %1966 = vmatpush2.msra.mxu0 0.0
    %1967 = vmatprep.subr.mxu0 0.0
    %1968 = vmatpush2.msra.mxu0 0.0
    %1969 = vmatprep.subr.mxu0 0.0
    %1970 = vmatpush2.msra.mxu0 0.0
    %1971 = vmatprep.subr.mxu0 0.0
    %1972 = vmatpush2.msra.mxu0 0.0
    %1973 = vmatprep.subr.mxu0 0.0
    %1974 = vmatpush2.msra.mxu0 0.0
    %1975 = vmatprep.subr.mxu0 0.0
    %1976 = vmatpush2.msra.mxu0 0.0
    %1977 = vmatprep.subr.mxu0 0.0
    %1978 = vmatpush2.msra.mxu0 0.0
    %1979 = vmatprep.subr.mxu0 0.0
    %1980 = vmatpush2.msra.mxu0 0.0
    %1981 = vmatprep.subr.mxu0 0.0
    %1982 = vmatpush2.msra.mxu0 0.0
    %1983 = vmatprep.subr.mxu0 0.0
    %1984 = vmatpush2.msra.mxu0 0.0
    %1985 = vmatprep.subr.mxu0 0.0
    %1986 = vmatpush2.msra.mxu0 0.0
    %1987 = vmatprep.subr.mxu0 0.0
    %1988 = vmatpush2.msra.mxu0 0.0
    %1989 = vmatprep.mubr.f32.mxu0 0.0
    %1990 = vmatmul.mubr.f32.gmra.mxu0 %v1920
    %v1991 = vpop.f32.mrf.mxu0
    %v1992 = vadd.f32 %v1828, %v1991
    %v1993 = vpop.f32.mrf.mxu0
    %1994 = vmatprep.mubr.f32.mxu0 0.0
    %1995 = vmatmul.mubr.f32.gmra.mxu0 %v1923
    %v1996 = vpop.f32.mrf.mxu0
    %v1997 = vadd.f32 %v1829, %v1996
    %v1998 = vpop.f32.mrf.mxu0
    %1999 = vdwg.mxu0
    %2000 = vst.msk [vmem:[#allocation14] sm:$0xff] %vm139, %v1992
    %2001 = vst.msk [vmem:[#allocation14 + $0x8] sm:$0xff] %vm139, %v1997
    // Predicated region
    $region66: #{tpu_custom_call.1} parent=1 // pred_check
      _
    $region67: #{tpu_custom_call.1} parent=1 // pred_check_branch
      %2003 = sbr.rel (0) target = $region69
    $region68: #{tpu_custom_call.1} parent=1 // pred_region
      %s2005 = ssub.s32 256, 256
      %2006 = vsyncadd [#allocation4], %s2005
      %s2007 = sshll.u32 [#allocation14], 4
      %s2008 = int_to_ptr.vmem [resolvable:$true] %s2007
      %2013 = dma.vmem_to_hbm [thread:$0]  %s2008, 256, %s9, [#allocation4], 128, 128, 8
    $region69: #{tpu_custom_call.1} parent=1 // pred_fallthru
      _
    // Predicated region
    $region70: #{tpu_custom_call.1} parent=1 // pred_check
      _
    $region71: #{tpu_custom_call.1} parent=1 // pred_check_branch
      %2015 = sbr.rel (0) target = $region73
    $region72: #{tpu_custom_call.1} parent=1 // pred_region
      %2016 = dma.done [#allocation4], 256
    $region73: #{tpu_custom_call.1} parent=1 // pred_fallthru
      _
    %2017 = vsyncpa [#allocation3], 1
    %2018 = vsyncpa [#allocation6], 1
    %2019 = vsyncpa [#allocation9], 1
    %2020 = vsyncpa [#allocation12], 1
    %2021 = vsyncpa [#allocation4], 1

</llo_original>
